<compile_context>
chip_gen: v6e
topology: v6e:2x2x1
jax: 0.10.0
libtpu: 0.0.40
codegen_flags: <defaults>
</compile_context>

<pallas_src>
import functools
import math

import jax
import jax.numpy as jnp
from jax import lax
from jax.experimental import pallas as pl
from jax.experimental.pallas import tpu as pltpu


# ----------------------------- helpers -----------------------------

def _layer_norm_f32(x, g, b, eps=1e-5):
    mean = jnp.mean(x, axis=-1, keepdims=True)
    c = x - mean
    var = jnp.mean(c * c, axis=-1, keepdims=True)
    return c * lax.rsqrt(var + eps) * g + b


def _activation(x, kind):
    if kind == "relu":
        return jnp.maximum(x, 0.0)
    if kind == "gelu":
        return jax.nn.gelu(x, approximate=False)
    raise ValueError(f"unsupported activation: {kind}")


# ----------------------------- fused Pallas kernel -----------------------------

def _encoder_layer_kernel(*refs, nhead, activation, has_pos):
    # TODO(synk): attn_mask / src_key_padding_mask not implemented (module defaults are None).
    if has_pos:
        (src_ref, pos_ref, wqk_ref, wv_ref, wo_ref, w1_ref, w2_ref, vec_ref,
         out_ref) = refs
    else:
        (src_ref, wqk_ref, wv_ref, wo_ref, w1_ref, w2_ref, vec_ref,
         out_ref) = refs
        pos_ref = None

    S, Bblk, D = src_ref.shape
    FF = w1_ref.shape[1]
    N = S * Bblk
    hd = D // nhead
    scale = 1.0 / math.sqrt(hd)
    cdt = wqk_ref.dtype                                   # MXU compute dtype (bf16)

    # ---- unpack the packed bias / LayerNorm vectors (f32, (1, n) slices) ----
    vec = vec_ref[...]                                    # (6, W)
    bqk = vec[0:1, :2 * D]
    b1  = vec[1:2, :FF]
    bv  = vec[2:3, :D]
    bo  = vec[2:3, D:2 * D]
    b2  = vec[3:4, :D]
    g1  = vec[4:5, :D]
    be1 = vec[4:5, D:2 * D]
    g2  = vec[5:6, :D]
    be2 = vec[5:6, D:2 * D]

    # ---- flatten the batch block: rows are ordered (s, b), batch id = row % Bblk ----
    src = src_ref[...].reshape(N, D)                      # f32
    if has_pos:
        qk_in = src + pos_ref[...].reshape(N, D)          # q = k = src + pos
    else:
        qk_in = src

    # ---- fused Q|K projection and V projection (bf16 MXU, f32 accumulation) ----
    qk = jnp.dot(qk_in.astype(cdt), wqk_ref[...],
                 preferred_element_type=jnp.float32) + bqk     # (N, 2D)
    v = jnp.dot(src.astype(cdt), wv_ref[...],
                preferred_element_type=jnp.float32) + bv       # (N, D)

    # ---- block-diagonal mask keeps attention within each batch element ----
    if Bblk > 1:
        rb = lax.broadcasted_iota(jnp.int32, (N, N), 0) % Bblk
        cb = lax.broadcasted_iota(jnp.int32, (N, N), 1) % Bblk
        mask_bias = jnp.where(rb == cb, 0.0, -1e30).astype(jnp.float32)
    else:
        mask_bias = None

    # ---- per-head softmax attention (bf16 MXU operands, f32 softmax) ----
    heads = []
    for h in range(nhead):                                # static, unrolled (nhead small)
        qh = qk[:, h * hd:(h + 1) * hd].astype(cdt)
        kh = qk[:, D + h * hd:D + (h + 1) * hd].astype(cdt)
        vh = v[:, h * hd:(h + 1) * hd].astype(cdt)
        s = lax.dot_general(qh, kh, (((1,), (1,)), ((), ())),   # q @ k^T
                            preferred_element_type=jnp.float32) * scale
        if mask_bias is not None:
            s = s + mask_bias
        s = s - jnp.max(s, axis=-1, keepdims=True)
        p = jnp.exp(s)
        p = p * pl.reciprocal(jnp.sum(p, axis=-1, keepdims=True), approx=True)
        heads.append(jnp.dot(p.astype(cdt), vh,
                             preferred_element_type=jnp.float32))   # (N, hd)

    # ---- single output projection (one K=D matmul instead of nhead K=hd ones) ----
    o = jnp.concatenate(heads, axis=-1)                   # (N, D), lane concat
    attn = jnp.dot(o.astype(cdt), wo_ref[...],
                   preferred_element_type=jnp.float32) + bo

    # ---- residual + LayerNorm1 (f32) ----
    x = _layer_norm_f32(src + attn, g1, be1)

    # ---- feed-forward (dropout == 0) ----
    h1 = jnp.dot(x.astype(cdt), w1_ref[...],
                 preferred_element_type=jnp.float32) + b1
    h1 = _activation(h1, activation)
    h2 = jnp.dot(h1.astype(cdt), w2_ref[...],
                 preferred_element_type=jnp.float32) + b2

    # ---- residual + LayerNorm2 (f32), store in the native (S, Bblk, D) layout ----
    y = _layer_norm_f32(x + h2, g2, be2)
    out_ref[...] = y.reshape(S, Bblk, D)


# ----------------------------- wrapper -----------------------------

def transformer_encoder_layer(src, params, pos=None, *, nhead, activation="relu",
                              batch_block=None):
    """PyTorch TransformerEncoderLayer.forward_post (normalize_before=False, dropout=0).

    src, pos: (S, B, D) float32 (PyTorch seq-first layout). Returns (S, B, D) float32.
    """
    S, B, D = src.shape
    assert D % nhead == 0, "d_model must be divisible by nhead"
    has_pos = pos is not None

    if batch_block is None:
        batch_block = B if (B <= 8 or B % 8 != 0) else 8
    assert B % batch_block == 0
    assert batch_block == B or batch_block % 8 == 0, \
        "batch_block must equal B or be a multiple of 8 (sublane tiling)"

    FF = params["w1"].shape[1]
    W = max(2 * D, FF)

    # pack the 9 small vectors into one (6, W) f32 array (fewer pallas inputs)
    def row(*vs):
        r = jnp.concatenate([v.reshape(-1) for v in vs])
        return jnp.pad(r, (0, W - r.shape[0]))

    vec = jnp.stack([
        row(params["bqk"]),
        row(params["b1"]),
        row(params["bv"], params["bo"]),
        row(params["b2"]),
        row(params["ln1_g"], params["ln1_b"]),
        row(params["ln2_g"], params["ln2_b"]),
    ])                                                     # (6, W) float32

    # block the *middle* batch axis of the native (S, B, D) layout (no swapaxes)
    tok_spec = pl.BlockSpec((S, batch_block, D), lambda b: (0, b, 0))
    full2d = lambda b: (0, 0)

    inputs = [src]
    in_specs = [tok_spec]
    if has_pos:
        inputs.append(pos)
        in_specs.append(tok_spec)
    for name in ("wqk", "wv", "wo", "w1", "w2"):
        a = params[name]
        inputs.append(a)
        in_specs.append(pl.BlockSpec(a.shape, full2d))
    inputs.append(vec)
    in_specs.append(pl.BlockSpec(vec.shape, full2d))

    # rough cost estimate for the whole call (helps XLA schedule around it)
    N = S * batch_block
    steps = B // batch_block
    hd = D // nhead
    flops = steps * (
        2 * N * D * (2 * D)          # fused Q|K projection
        + 2 * N * D * D              # V projection
        + nhead * (2 * 2 * N * N * hd)  # scores + p@v
        + 2 * N * D * D              # output projection
        + 2 * N * D * FF * 2         # FFN
    )
    transcendentals = steps * (N * N + 6 * N)
    bytes_accessed = (
        (2 + (1 if has_pos else 0)) * int(src.size) * 4
        + sum(int(params[n].size) * 2 for n in ("wqk", "wv", "wo", "w1", "w2"))
        + int(vec.size) * 4
    )

    return pl.pallas_call(
        functools.partial(_encoder_layer_kernel, nhead=nhead,
                          activation=activation, has_pos=has_pos),
        out_shape=jax.ShapeDtypeStruct((S, B, D), jnp.float32),
        grid=(B // batch_block,),
        in_specs=in_specs,
        out_specs=tok_spec,
        compiler_params=pltpu.CompilerParams(
            dimension_semantics=("parallel",),         # megacore sharding on v7x
            vmem_limit_bytes=32 * 1024 * 1024),
        cost_estimate=pl.CostEstimate(flops=flops,
                                      transcendentals=transcendentals,
                                      bytes_accessed=bytes_accessed),
    )(*inputs)


# ----------------------------- parameters -----------------------------

def init_params(key, d_model, dim_feedforward, weight_dtype=jnp.bfloat16):
    """Weights stored as (in, out); Q|K fused along the output dim. Vectors are 1-D f32."""
    def xavier(k, fan_in, fan_out):
        limit = math.sqrt(6.0 / (fan_in + fan_out))
        return jax.random.uniform(k, (fan_in, fan_out), jnp.float32, -limit, limit)

    D, FF = d_model, dim_feedforward
    ks = jax.random.split(key, 12)
    bias = lambda k, n: jax.random.uniform(k, (n,), jnp.float32, -0.05, 0.05)
    wq = xavier(ks[0], D, D)
    wk = xavier(ks[1], D, D)
    return {
        "wqk": jnp.concatenate([wq, wk], axis=1).astype(weight_dtype),   # (D, 2D)
        "bqk": bias(ks[6], 2 * D),
        "wv": xavier(ks[2], D, D).astype(weight_dtype), "bv": bias(ks[7], D),
        "wo": xavier(ks[3], D, D).astype(weight_dtype), "bo": bias(ks[8], D),
        "w1": xavier(ks[4], D, FF).astype(weight_dtype), "b1": bias(ks[9], FF),
        "w2": xavier(ks[5], FF, D).astype(weight_dtype), "b2": bias(ks[10], D),
        "ln1_g": jnp.ones((D,), jnp.float32), "ln1_b": jnp.zeros((D,), jnp.float32),
        "ln2_g": jnp.ones((D,), jnp.float32), "ln2_b": jnp.zeros((D,), jnp.float32),
    }


# ----------------------------- pure-JAX reference -----------------------------

def reference_layer(src, params, pos, *, nhead, activation):
    """Same math in plain JAX, mirroring the kernel's bf16 MXU-operand casts."""
    S, B, D = src.shape
    hd = D // nhead
    cdt = params["wqk"].dtype
    dotf = functools.partial(jnp.einsum, preferred_element_type=jnp.float32)

    x = src
    qk_in = x + pos if pos is not None else x
    qk = dotf("sbk,kn->sbn", qk_in.astype(cdt), params["wqk"]) + params["bqk"]
    v = dotf("sbk,kn->sbn", x.astype(cdt), params["wv"]) + params["bv"]
    q, k = qk[..., :D], qk[..., D:]

    def split(t):                                    # (S,B,D) -> (B,H,S,hd)
        return t.reshape(S, B, nhead, hd).transpose(1, 2, 0, 3)

    qh, kh, vh = split(q), split(k), split(v)
    s = jnp.einsum("bhqd,bhkd->bhqk", qh.astype(cdt), kh.astype(cdt),
                   preferred_element_type=jnp.float32) / math.sqrt(hd)
    p = jax.nn.softmax(s, axis=-1)
    o = jnp.einsum("bhqk,bhkd->bhqd", p.astype(cdt), vh.astype(cdt),
                   preferred_element_type=jnp.float32)
    o = o.transpose(2, 0, 1, 3).reshape(S, B, D)
    attn = dotf("sbk,kn->sbn", o.astype(cdt), params["wo"]) + params["bo"]

    x = _layer_norm_f32(x + attn, params["ln1_g"], params["ln1_b"])
    h = dotf("sbk,kn->sbn", x.astype(cdt), params["w1"]) + params["b1"]
    h = _activation(h, activation)
    h = dotf("sbk,kn->sbn", h.astype(cdt), params["w2"]) + params["b2"]
    return _layer_norm_f32(x + h, params["ln2_g"], params["ln2_b"])


# ----------------------------- main -----------------------------

if __name__ == "__main__":
    # small, lane-dense config: seq=8, batch=2, d_model=128, nhead=4, ff=256
    S, B, D, NHEAD, FF = 8, 2, 128, 4, 256

    key = jax.random.PRNGKey(0)
    kp, kx = jax.random.split(key)
    params = init_params(kp, D, FF)
    src = jax.random.normal(kx, (S, B, D), dtype=jnp.float32)

    # sinusoidal positional embedding used as the optional `pos` argument
    posn = jnp.arange(S, dtype=jnp.float32)[:, None]
    div = jnp.exp(jnp.arange(0, D, 2, dtype=jnp.float32) * (-math.log(10000.0) / D))
    pe = jnp.stack([jnp.sin(posn * div), jnp.cos(posn * div)], axis=-1).reshape(S, D)
    pos = jnp.broadcast_to(pe[:, None, :], (S, B, D))

    fwd = jax.jit(functools.partial(transformer_encoder_layer,
                                    nhead=NHEAD, activation="relu"))
    out = fwd(src, params, pos)
    jax.block_until_ready(out)

    ref = reference_layer(src, params, pos, nhead=NHEAD, activation="relu")
    err = float(jnp.max(jnp.abs(out - ref)))

    assert out.shape == (S, B, D)
    assert bool(jnp.all(jnp.isfinite(out)))
    assert err < 2e-2, f"max abs err vs reference: {err}"
    print("KERNEL_OK")
</pallas_src>

<mosaic_0001>
module attributes {stable_mosaic.version = 11 : i64} {
  func.func @_encoder_layer_kernel(%arg0: i32, %arg1: memref<8x2x128xf32, #tpu.memory_space<vmem>>, %arg2: memref<8x2x128xf32, #tpu.memory_space<vmem>>, %arg3: memref<128x256xbf16, #tpu.memory_space<vmem>>, %arg4: memref<128x128xbf16, #tpu.memory_space<vmem>>, %arg5: memref<128x128xbf16, #tpu.memory_space<vmem>>, %arg6: memref<128x256xbf16, #tpu.memory_space<vmem>>, %arg7: memref<256x128xbf16, #tpu.memory_space<vmem>>, %arg8: memref<6x256xf32, #tpu.memory_space<vmem>>, %arg9: memref<8x2x128xf32, #tpu.memory_space<vmem>>) attributes {dimension_semantics = [#tpu.dimension_semantics<parallel>], iteration_bounds = array<i64: 1>, scalar_prefetch = 0 : i64, scratch_operands = 0 : i64, tpu.core_type = #tpu.core_type<tc>, window_params = [{transform_indices = @transform_0, window_bounds = array<i64: 8, 2, 128>}, {transform_indices = @transform_1, window_bounds = array<i64: 8, 2, 128>}, {pipeline_mode = #tpu.pipeline_mode<synchronous>, transform_indices = @transform_2, window_bounds = array<i64: 128, 256>}, {pipeline_mode = #tpu.pipeline_mode<synchronous>, transform_indices = @transform_3, window_bounds = array<i64: 128, 128>}, {pipeline_mode = #tpu.pipeline_mode<synchronous>, transform_indices = @transform_4, window_bounds = array<i64: 128, 128>}, {pipeline_mode = #tpu.pipeline_mode<synchronous>, transform_indices = @transform_5, window_bounds = array<i64: 128, 256>}, {pipeline_mode = #tpu.pipeline_mode<synchronous>, transform_indices = @transform_6, window_bounds = array<i64: 256, 128>}, {pipeline_mode = #tpu.pipeline_mode<synchronous>, transform_indices = @transform_7, window_bounds = array<i64: 6, 256>}, {transform_indices = @transform_8, window_bounds = array<i64: 8, 2, 128>}]} {
    %c0 = arith.constant 0 : index
    %c0_0 = arith.constant 0 : index
    %0 = vector.load %arg8[%c0, %c0_0] : memref<6x256xf32, #tpu.memory_space<vmem>>, vector<6x256xf32>
    %1 = vector.extract_strided_slice %0 {offsets = [0, 0], sizes = [1, 256], strides = [1, 1]} : vector<6x256xf32> to vector<1x256xf32>
    %2 = vector.extract_strided_slice %0 {offsets = [1, 0], sizes = [1, 256], strides = [1, 1]} : vector<6x256xf32> to vector<1x256xf32>
    %3 = vector.extract_strided_slice %0 {offsets = [2, 0], sizes = [1, 128], strides = [1, 1]} : vector<6x256xf32> to vector<1x128xf32>
    %4 = vector.extract_strided_slice %0 {offsets = [2, 128], sizes = [1, 128], strides = [1, 1]} : vector<6x256xf32> to vector<1x128xf32>
    %5 = vector.extract_strided_slice %0 {offsets = [3, 0], sizes = [1, 128], strides = [1, 1]} : vector<6x256xf32> to vector<1x128xf32>
    %6 = vector.extract_strided_slice %0 {offsets = [4, 0], sizes = [1, 128], strides = [1, 1]} : vector<6x256xf32> to vector<1x128xf32>
    %7 = vector.extract_strided_slice %0 {offsets = [4, 128], sizes = [1, 128], strides = [1, 1]} : vector<6x256xf32> to vector<1x128xf32>
    %8 = vector.extract_strided_slice %0 {offsets = [5, 0], sizes = [1, 128], strides = [1, 1]} : vector<6x256xf32> to vector<1x128xf32>
    %9 = vector.extract_strided_slice %0 {offsets = [5, 128], sizes = [1, 128], strides = [1, 1]} : vector<6x256xf32> to vector<1x128xf32>
    %c0_1 = arith.constant 0 : index
    %c0_2 = arith.constant 0 : index
    %c0_3 = arith.constant 0 : index
    %10 = vector.load %arg1[%c0_1, %c0_2, %c0_3] : memref<8x2x128xf32, #tpu.memory_space<vmem>>, vector<8x2x128xf32>
    %11 = vector.shape_cast %10 : vector<8x2x128xf32> to vector<16x128xf32>
    %c0_4 = arith.constant 0 : index
    %c0_5 = arith.constant 0 : index
    %c0_6 = arith.constant 0 : index
    %12 = vector.load %arg2[%c0_4, %c0_5, %c0_6] : memref<8x2x128xf32, #tpu.memory_space<vmem>>, vector<8x2x128xf32>
    %13 = vector.shape_cast %12 : vector<8x2x128xf32> to vector<16x128xf32>
    %14 = arith.addf %11, %13 : vector<16x128xf32>
    %15 = arith.truncf %14 : vector<16x128xf32> to vector<16x128xbf16>
    %c0_7 = arith.constant 0 : index
    %c0_8 = arith.constant 0 : index
    %16 = vector.load %arg3[%c0_7, %c0_8] : memref<128x256xbf16, #tpu.memory_space<vmem>>, vector<128x256xbf16>
    %cst = arith.constant dense<0.000000e+00> : vector<16x256xf32>
    %17 = tpu.matmul %15, %16, %cst {dimension_numbers = #tpu.dot_dimension_numbers<[1], [0], [0], [1], [0, 0, 1, 1], [], []>} : vector<16x128xbf16>, vector<128x256xbf16>, vector<16x256xf32> -> vector<16x256xf32>
    %18 = vector.broadcast %1 : vector<1x256xf32> to vector<16x256xf32>
    %19 = arith.addf %17, %18 : vector<16x256xf32>
    %20 = arith.truncf %11 : vector<16x128xf32> to vector<16x128xbf16>
    %c0_9 = arith.constant 0 : index
    %c0_10 = arith.constant 0 : index
    %21 = vector.load %arg4[%c0_9, %c0_10] : memref<128x128xbf16, #tpu.memory_space<vmem>>, vector<128x128xbf16>
    %cst_11 = arith.constant dense<0.000000e+00> : vector<16x128xf32>
    %22 = tpu.matmul %20, %21, %cst_11 {dimension_numbers = #tpu.dot_dimension_numbers<[1], [0], [0], [1], [0, 0, 1, 1], [], []>} : vector<16x128xbf16>, vector<128x128xbf16>, vector<16x128xf32> -> vector<16x128xf32>
    %23 = vector.broadcast %3 : vector<1x128xf32> to vector<16x128xf32>
    %24 = arith.addf %22, %23 : vector<16x128xf32>
    %25 = tpu.iota {dimensions = array<i32: 0>} : vector<16x16xi32>
    %c2_i32 = arith.constant 2 : i32
    %c0_i32 = arith.constant 0 : i32
    %26 = arith.cmpi eq, %c2_i32, %c0_i32 : i32
    %c1_i32 = arith.constant 1 : i32
    %27 = arith.select %26, %c1_i32, %c2_i32 : i32
    %28 = vector.broadcast %27 : i32 to vector<16x16xi32>
    %29 = arith.remsi %25, %28 : vector<16x16xi32>
    %c0_i32_12 = arith.constant 0 : i32
    %30 = vector.broadcast %c0_i32_12 : i32 to vector<16x16xi32>
    %31 = arith.cmpi ne, %29, %30 : vector<16x16xi32>
    %c0_i32_13 = arith.constant 0 : i32
    %32 = vector.broadcast %c0_i32_13 : i32 to vector<16x16xi32>
    %33 = arith.cmpi slt, %29, %32 : vector<16x16xi32>
    %c0_i32_14 = arith.constant 0 : i32
    %34 = arith.cmpi slt, %27, %c0_i32_14 : i32
    %35 = vector.broadcast %34 : i1 to vector<16x16xi1>
    %36 = vector.broadcast %35 : vector<16x16xi1> to vector<16x16xi1>
    %37 = arith.xori %33, %36 : vector<16x16xi1>
    %38 = arith.andi %37, %31 : vector<16x16xi1>
    %39 = vector.broadcast %27 : i32 to vector<16x16xi32>
    %40 = arith.addi %29, %39 : vector<16x16xi32>
    %41 = arith.select %38, %40, %29 : vector<16x16xi1>, vector<16x16xi32>
    %42 = tpu.iota {dimensions = array<i32: 1>} : vector<16x16xi32>
    %c2_i32_15 = arith.constant 2 : i32
    %c0_i32_16 = arith.constant 0 : i32
    %43 = arith.cmpi eq, %c2_i32_15, %c0_i32_16 : i32
    %c1_i32_17 = arith.constant 1 : i32
    %44 = arith.select %43, %c1_i32_17, %c2_i32_15 : i32
    %45 = vector.broadcast %44 : i32 to vector<16x16xi32>
    %46 = arith.remsi %42, %45 : vector<16x16xi32>
    %c0_i32_18 = arith.constant 0 : i32
    %47 = vector.broadcast %c0_i32_18 : i32 to vector<16x16xi32>
    %48 = arith.cmpi ne, %46, %47 : vector<16x16xi32>
    %c0_i32_19 = arith.constant 0 : i32
    %49 = vector.broadcast %c0_i32_19 : i32 to vector<16x16xi32>
    %50 = arith.cmpi slt, %46, %49 : vector<16x16xi32>
    %c0_i32_20 = arith.constant 0 : i32
    %51 = arith.cmpi slt, %44, %c0_i32_20 : i32
    %52 = vector.broadcast %51 : i1 to vector<16x16xi1>
    %53 = vector.broadcast %52 : vector<16x16xi1> to vector<16x16xi1>
    %54 = arith.xori %50, %53 : vector<16x16xi1>
    %55 = arith.andi %54, %48 : vector<16x16xi1>
    %56 = vector.broadcast %44 : i32 to vector<16x16xi32>
    %57 = arith.addi %46, %56 : vector<16x16xi32>
    %58 = arith.select %55, %57, %46 : vector<16x16xi1>, vector<16x16xi32>
    %59 = arith.cmpi eq, %41, %58 : vector<16x16xi32>
    %cst_21 = arith.constant 0.000000e+00 : f32
    %cst_22 = arith.constant -1.000000e+30 : f32
    %60 = vector.broadcast %cst_21 : f32 to vector<16x16xf32>
    %61 = vector.broadcast %cst_22 : f32 to vector<16x16xf32>
    %62 = arith.select %59, %60, %61 : vector<16x16xi1>, vector<16x16xf32>
    %63 = vector.extract_strided_slice %19 {offsets = [0, 0], sizes = [16, 32], strides = [1, 1]} : vector<16x256xf32> to vector<16x32xf32>
    %64 = arith.truncf %63 : vector<16x32xf32> to vector<16x32xbf16>
    %65 = vector.extract_strided_slice %19 {offsets = [0, 128], sizes = [16, 32], strides = [1, 1]} : vector<16x256xf32> to vector<16x32xf32>
    %66 = arith.truncf %65 : vector<16x32xf32> to vector<16x32xbf16>
    %67 = vector.extract_strided_slice %24 {offsets = [0, 0], sizes = [16, 32], strides = [1, 1]} : vector<16x128xf32> to vector<16x32xf32>
    %68 = arith.truncf %67 : vector<16x32xf32> to vector<16x32xbf16>
    %cst_23 = arith.constant dense<0.000000e+00> : vector<16x16xf32>
    %69 = tpu.matmul %64, %66, %cst_23 {dimension_numbers = #tpu.dot_dimension_numbers<[1], [1], [0], [0], [0, 0, 1, 0], [], []>} : vector<16x32xbf16>, vector<16x32xbf16>, vector<16x16xf32> -> vector<16x16xf32>
    %cst_24 = arith.constant 0.176776692 : f32
    %70 = vector.broadcast %cst_24 : f32 to vector<16x16xf32>
    %71 = arith.mulf %69, %70 : vector<16x16xf32>
    %72 = arith.addf %71, %62 : vector<16x16xf32>
    %cst_25 = arith.constant dense<0xFF800000> : vector<16xf32>
    %73 = vector.multi_reduction <maximumf>, %72, %cst_25 [1] : vector<16x16xf32> to vector<16xf32>
    %74 = vector.shape_cast %73 : vector<16xf32> to vector<16x1xf32>
    %75 = vector.broadcast %74 : vector<16x1xf32> to vector<16x16xf32>
    %76 = arith.subf %72, %75 : vector<16x16xf32>
    %77 = math.exp %76 : vector<16x16xf32>
    %cst_26 = arith.constant dense<0.000000e+00> : vector<16xf32>
    %78 = vector.multi_reduction <add>, %77, %cst_26 [1] : vector<16x16xf32> to vector<16xf32>
    %79 = vector.shape_cast %78 : vector<16xf32> to vector<16x1xf32>
    %80 = tpu.reciprocal %79 {approx = true} : vector<16x1xf32> -> vector<16x1xf32>
    %81 = vector.broadcast %80 : vector<16x1xf32> to vector<16x16xf32>
    %82 = arith.mulf %77, %81 : vector<16x16xf32>
    %83 = arith.truncf %82 : vector<16x16xf32> to vector<16x16xbf16>
    %cst_27 = arith.constant dense<0.000000e+00> : vector<16x32xf32>
    %84 = tpu.matmul %83, %68, %cst_27 {dimension_numbers = #tpu.dot_dimension_numbers<[1], [0], [0], [1], [0, 0, 1, 1], [], []>} : vector<16x16xbf16>, vector<16x32xbf16>, vector<16x32xf32> -> vector<16x32xf32>
    %85 = vector.extract_strided_slice %19 {offsets = [0, 32], sizes = [16, 32], strides = [1, 1]} : vector<16x256xf32> to vector<16x32xf32>
    %86 = arith.truncf %85 : vector<16x32xf32> to vector<16x32xbf16>
    %87 = vector.extract_strided_slice %19 {offsets = [0, 160], sizes = [16, 32], strides = [1, 1]} : vector<16x256xf32> to vector<16x32xf32>
    %88 = arith.truncf %87 : vector<16x32xf32> to vector<16x32xbf16>
    %89 = vector.extract_strided_slice %24 {offsets = [0, 32], sizes = [16, 32], strides = [1, 1]} : vector<16x128xf32> to vector<16x32xf32>
    %90 = arith.truncf %89 : vector<16x32xf32> to vector<16x32xbf16>
    %cst_28 = arith.constant dense<0.000000e+00> : vector<16x16xf32>
    %91 = tpu.matmul %86, %88, %cst_28 {dimension_numbers = #tpu.dot_dimension_numbers<[1], [1], [0], [0], [0, 0, 1, 0], [], []>} : vector<16x32xbf16>, vector<16x32xbf16>, vector<16x16xf32> -> vector<16x16xf32>
    %cst_29 = arith.constant 0.176776692 : f32
    %92 = vector.broadcast %cst_29 : f32 to vector<16x16xf32>
    %93 = arith.mulf %91, %92 : vector<16x16xf32>
    %94 = arith.addf %93, %62 : vector<16x16xf32>
    %cst_30 = arith.constant dense<0xFF800000> : vector<16xf32>
    %95 = vector.multi_reduction <maximumf>, %94, %cst_30 [1] : vector<16x16xf32> to vector<16xf32>
    %96 = vector.shape_cast %95 : vector<16xf32> to vector<16x1xf32>
    %97 = vector.broadcast %96 : vector<16x1xf32> to vector<16x16xf32>
    %98 = arith.subf %94, %97 : vector<16x16xf32>
    %99 = math.exp %98 : vector<16x16xf32>
    %cst_31 = arith.constant dense<0.000000e+00> : vector<16xf32>
    %100 = vector.multi_reduction <add>, %99, %cst_31 [1] : vector<16x16xf32> to vector<16xf32>
    %101 = vector.shape_cast %100 : vector<16xf32> to vector<16x1xf32>
    %102 = tpu.reciprocal %101 {approx = true} : vector<16x1xf32> -> vector<16x1xf32>
    %103 = vector.broadcast %102 : vector<16x1xf32> to vector<16x16xf32>
    %104 = arith.mulf %99, %103 : vector<16x16xf32>
    %105 = arith.truncf %104 : vector<16x16xf32> to vector<16x16xbf16>
    %cst_32 = arith.constant dense<0.000000e+00> : vector<16x32xf32>
    %106 = tpu.matmul %105, %90, %cst_32 {dimension_numbers = #tpu.dot_dimension_numbers<[1], [0], [0], [1], [0, 0, 1, 1], [], []>} : vector<16x16xbf16>, vector<16x32xbf16>, vector<16x32xf32> -> vector<16x32xf32>
    %107 = vector.extract_strided_slice %19 {offsets = [0, 64], sizes = [16, 32], strides = [1, 1]} : vector<16x256xf32> to vector<16x32xf32>
    %108 = arith.truncf %107 : vector<16x32xf32> to vector<16x32xbf16>
    %109 = vector.extract_strided_slice %19 {offsets = [0, 192], sizes = [16, 32], strides = [1, 1]} : vector<16x256xf32> to vector<16x32xf32>
    %110 = arith.truncf %109 : vector<16x32xf32> to vector<16x32xbf16>
    %111 = vector.extract_strided_slice %24 {offsets = [0, 64], sizes = [16, 32], strides = [1, 1]} : vector<16x128xf32> to vector<16x32xf32>
    %112 = arith.truncf %111 : vector<16x32xf32> to vector<16x32xbf16>
    %cst_33 = arith.constant dense<0.000000e+00> : vector<16x16xf32>
    %113 = tpu.matmul %108, %110, %cst_33 {dimension_numbers = #tpu.dot_dimension_numbers<[1], [1], [0], [0], [0, 0, 1, 0], [], []>} : vector<16x32xbf16>, vector<16x32xbf16>, vector<16x16xf32> -> vector<16x16xf32>
    %cst_34 = arith.constant 0.176776692 : f32
    %114 = vector.broadcast %cst_34 : f32 to vector<16x16xf32>
    %115 = arith.mulf %113, %114 : vector<16x16xf32>
    %116 = arith.addf %115, %62 : vector<16x16xf32>
    %cst_35 = arith.constant dense<0xFF800000> : vector<16xf32>
    %117 = vector.multi_reduction <maximumf>, %116, %cst_35 [1] : vector<16x16xf32> to vector<16xf32>
    %118 = vector.shape_cast %117 : vector<16xf32> to vector<16x1xf32>
    %119 = vector.broadcast %118 : vector<16x1xf32> to vector<16x16xf32>
    %120 = arith.subf %116, %119 : vector<16x16xf32>
    %121 = math.exp %120 : vector<16x16xf32>
    %cst_36 = arith.constant dense<0.000000e+00> : vector<16xf32>
    %122 = vector.multi_reduction <add>, %121, %cst_36 [1] : vector<16x16xf32> to vector<16xf32>
    %123 = vector.shape_cast %122 : vector<16xf32> to vector<16x1xf32>
    %124 = tpu.reciprocal %123 {approx = true} : vector<16x1xf32> -> vector<16x1xf32>
    %125 = vector.broadcast %124 : vector<16x1xf32> to vector<16x16xf32>
    %126 = arith.mulf %121, %125 : vector<16x16xf32>
    %127 = arith.truncf %126 : vector<16x16xf32> to vector<16x16xbf16>
    %cst_37 = arith.constant dense<0.000000e+00> : vector<16x32xf32>
    %128 = tpu.matmul %127, %112, %cst_37 {dimension_numbers = #tpu.dot_dimension_numbers<[1], [0], [0], [1], [0, 0, 1, 1], [], []>} : vector<16x16xbf16>, vector<16x32xbf16>, vector<16x32xf32> -> vector<16x32xf32>
    %129 = vector.extract_strided_slice %19 {offsets = [0, 96], sizes = [16, 32], strides = [1, 1]} : vector<16x256xf32> to vector<16x32xf32>
    %130 = arith.truncf %129 : vector<16x32xf32> to vector<16x32xbf16>
    %131 = vector.extract_strided_slice %19 {offsets = [0, 224], sizes = [16, 32], strides = [1, 1]} : vector<16x256xf32> to vector<16x32xf32>
    %132 = arith.truncf %131 : vector<16x32xf32> to vector<16x32xbf16>
    %133 = vector.extract_strided_slice %24 {offsets = [0, 96], sizes = [16, 32], strides = [1, 1]} : vector<16x128xf32> to vector<16x32xf32>
    %134 = arith.truncf %133 : vector<16x32xf32> to vector<16x32xbf16>
    %cst_38 = arith.constant dense<0.000000e+00> : vector<16x16xf32>
    %135 = tpu.matmul %130, %132, %cst_38 {dimension_numbers = #tpu.dot_dimension_numbers<[1], [1], [0], [0], [0, 0, 1, 0], [], []>} : vector<16x32xbf16>, vector<16x32xbf16>, vector<16x16xf32> -> vector<16x16xf32>
    %cst_39 = arith.constant 0.176776692 : f32
    %136 = vector.broadcast %cst_39 : f32 to vector<16x16xf32>
    %137 = arith.mulf %135, %136 : vector<16x16xf32>
    %138 = arith.addf %137, %62 : vector<16x16xf32>
    %cst_40 = arith.constant dense<0xFF800000> : vector<16xf32>
    %139 = vector.multi_reduction <maximumf>, %138, %cst_40 [1] : vector<16x16xf32> to vector<16xf32>
    %140 = vector.shape_cast %139 : vector<16xf32> to vector<16x1xf32>
    %141 = vector.broadcast %140 : vector<16x1xf32> to vector<16x16xf32>
    %142 = arith.subf %138, %141 : vector<16x16xf32>
    %143 = math.exp %142 : vector<16x16xf32>
    %cst_41 = arith.constant dense<0.000000e+00> : vector<16xf32>
    %144 = vector.multi_reduction <add>, %143, %cst_41 [1] : vector<16x16xf32> to vector<16xf32>
    %145 = vector.shape_cast %144 : vector<16xf32> to vector<16x1xf32>
    %146 = tpu.reciprocal %145 {approx = true} : vector<16x1xf32> -> vector<16x1xf32>
    %147 = vector.broadcast %146 : vector<16x1xf32> to vector<16x16xf32>
    %148 = arith.mulf %143, %147 : vector<16x16xf32>
    %149 = arith.truncf %148 : vector<16x16xf32> to vector<16x16xbf16>
    %cst_42 = arith.constant dense<0.000000e+00> : vector<16x32xf32>
    %150 = tpu.matmul %149, %134, %cst_42 {dimension_numbers = #tpu.dot_dimension_numbers<[1], [0], [0], [1], [0, 0, 1, 1], [], []>} : vector<16x16xbf16>, vector<16x32xbf16>, vector<16x32xf32> -> vector<16x32xf32>
    %151 = tpu.concatenate %84, %106, %128, %150 in 1 : vector<16x32xf32>, vector<16x32xf32>, vector<16x32xf32>, vector<16x32xf32> -> vector<16x128xf32>
    %152 = arith.truncf %151 : vector<16x128xf32> to vector<16x128xbf16>
    %c0_43 = arith.constant 0 : index
    %c0_44 = arith.constant 0 : index
    %153 = vector.load %arg5[%c0_43, %c0_44] : memref<128x128xbf16, #tpu.memory_space<vmem>>, vector<128x128xbf16>
    %cst_45 = arith.constant dense<0.000000e+00> : vector<16x128xf32>
    %154 = tpu.matmul %152, %153, %cst_45 {dimension_numbers = #tpu.dot_dimension_numbers<[1], [0], [0], [1], [0, 0, 1, 1], [], []>} : vector<16x128xbf16>, vector<128x128xbf16>, vector<16x128xf32> -> vector<16x128xf32>
    %155 = vector.broadcast %4 : vector<1x128xf32> to vector<16x128xf32>
    %156 = arith.addf %154, %155 : vector<16x128xf32>
    %157 = arith.addf %11, %156 : vector<16x128xf32>
    %cst_46 = arith.constant dense<0.000000e+00> : vector<16xf32>
    %158 = vector.multi_reduction <add>, %157, %cst_46 [1] : vector<16x128xf32> to vector<16xf32>
    %159 = vector.shape_cast %158 : vector<16xf32> to vector<16x1xf32>
    %cst_47 = arith.constant 1.280000e+02 : f32
    %160 = vector.broadcast %cst_47 : f32 to vector<16x1xf32>
    %161 = arith.divf %159, %160 : vector<16x1xf32>
    %162 = vector.broadcast %161 : vector<16x1xf32> to vector<16x128xf32>
    %163 = arith.subf %157, %162 : vector<16x128xf32>
    %164 = arith.mulf %163, %163 : vector<16x128xf32>
    %cst_48 = arith.constant dense<0.000000e+00> : vector<16xf32>
    %165 = vector.multi_reduction <add>, %164, %cst_48 [1] : vector<16x128xf32> to vector<16xf32>
    %166 = vector.shape_cast %165 : vector<16xf32> to vector<16x1xf32>
    %cst_49 = arith.constant 1.280000e+02 : f32
    %167 = vector.broadcast %cst_49 : f32 to vector<16x1xf32>
    %168 = arith.divf %166, %167 : vector<16x1xf32>
    %cst_50 = arith.constant 9.99999974E-6 : f32
    %169 = vector.broadcast %cst_50 : f32 to vector<16x1xf32>
    %170 = arith.addf %168, %169 : vector<16x1xf32>
    %171 = math.rsqrt %170 : vector<16x1xf32>
    %172 = vector.broadcast %171 : vector<16x1xf32> to vector<16x128xf32>
    %173 = arith.mulf %163, %172 : vector<16x128xf32>
    %174 = vector.broadcast %6 : vector<1x128xf32> to vector<16x128xf32>
    %175 = arith.mulf %173, %174 : vector<16x128xf32>
    %176 = vector.broadcast %7 : vector<1x128xf32> to vector<16x128xf32>
    %177 = arith.addf %175, %176 : vector<16x128xf32>
    %178 = arith.truncf %177 : vector<16x128xf32> to vector<16x128xbf16>
    %c0_51 = arith.constant 0 : index
    %c0_52 = arith.constant 0 : index
    %179 = vector.load %arg6[%c0_51, %c0_52] : memref<128x256xbf16, #tpu.memory_space<vmem>>, vector<128x256xbf16>
    %cst_53 = arith.constant dense<0.000000e+00> : vector<16x256xf32>
    %180 = tpu.matmul %178, %179, %cst_53 {dimension_numbers = #tpu.dot_dimension_numbers<[1], [0], [0], [1], [0, 0, 1, 1], [], []>} : vector<16x128xbf16>, vector<128x256xbf16>, vector<16x256xf32> -> vector<16x256xf32>
    %181 = vector.broadcast %2 : vector<1x256xf32> to vector<16x256xf32>
    %182 = arith.addf %180, %181 : vector<16x256xf32>
    %cst_54 = arith.constant 0.000000e+00 : f32
    %183 = vector.broadcast %cst_54 : f32 to vector<16x256xf32>
    %184 = arith.maximumf %182, %183 : vector<16x256xf32>
    %185 = arith.truncf %184 : vector<16x256xf32> to vector<16x256xbf16>
    %c0_55 = arith.constant 0 : index
    %c0_56 = arith.constant 0 : index
    %186 = vector.load %arg7[%c0_55, %c0_56] : memref<256x128xbf16, #tpu.memory_space<vmem>>, vector<256x128xbf16>
    %cst_57 = arith.constant dense<0.000000e+00> : vector<16x128xf32>
    %187 = tpu.matmul %185, %186, %cst_57 {dimension_numbers = #tpu.dot_dimension_numbers<[1], [0], [0], [1], [0, 0, 1, 1], [], []>} : vector<16x256xbf16>, vector<256x128xbf16>, vector<16x128xf32> -> vector<16x128xf32>
    %188 = vector.broadcast %5 : vector<1x128xf32> to vector<16x128xf32>
    %189 = arith.addf %187, %188 : vector<16x128xf32>
    %190 = arith.addf %177, %189 : vector<16x128xf32>
    %cst_58 = arith.constant dense<0.000000e+00> : vector<16xf32>
    %191 = vector.multi_reduction <add>, %190, %cst_58 [1] : vector<16x128xf32> to vector<16xf32>
    %192 = vector.shape_cast %191 : vector<16xf32> to vector<16x1xf32>
    %cst_59 = arith.constant 1.280000e+02 : f32
    %193 = vector.broadcast %cst_59 : f32 to vector<16x1xf32>
    %194 = arith.divf %192, %193 : vector<16x1xf32>
    %195 = vector.broadcast %194 : vector<16x1xf32> to vector<16x128xf32>
    %196 = arith.subf %190, %195 : vector<16x128xf32>
    %197 = arith.mulf %196, %196 : vector<16x128xf32>
    %cst_60 = arith.constant dense<0.000000e+00> : vector<16xf32>
    %198 = vector.multi_reduction <add>, %197, %cst_60 [1] : vector<16x128xf32> to vector<16xf32>
    %199 = vector.shape_cast %198 : vector<16xf32> to vector<16x1xf32>
    %cst_61 = arith.constant 1.280000e+02 : f32
    %200 = vector.broadcast %cst_61 : f32 to vector<16x1xf32>
    %201 = arith.divf %199, %200 : vector<16x1xf32>
    %cst_62 = arith.constant 9.99999974E-6 : f32
    %202 = vector.broadcast %cst_62 : f32 to vector<16x1xf32>
    %203 = arith.addf %201, %202 : vector<16x1xf32>
    %204 = math.rsqrt %203 : vector<16x1xf32>
    %205 = vector.broadcast %204 : vector<16x1xf32> to vector<16x128xf32>
    %206 = arith.mulf %196, %205 : vector<16x128xf32>
    %207 = vector.broadcast %8 : vector<1x128xf32> to vector<16x128xf32>
    %208 = arith.mulf %206, %207 : vector<16x128xf32>
    %209 = vector.broadcast %9 : vector<1x128xf32> to vector<16x128xf32>
    %210 = arith.addf %208, %209 : vector<16x128xf32>
    %211 = vector.shape_cast %210 : vector<16x128xf32> to vector<8x2x128xf32>
    %c0_63 = arith.constant 0 : index
    %c0_64 = arith.constant 0 : index
    %c0_65 = arith.constant 0 : index
    %212 = vector.load %arg9[%c0_63, %c0_64, %c0_65] : memref<8x2x128xf32, #tpu.memory_space<vmem>>, vector<8x2x128xf32>
    tpu.vector_store %arg9[%c0_63, %c0_64, %c0_65], %211 {strides = array<i32>} : memref<8x2x128xf32, #tpu.memory_space<vmem>>, vector<8x2x128xf32>,
    return
  }
  func.func @transform_0(%arg0: i32) -> (i32, i32, i32) {
    %c0_i32 = arith.constant 0 : i32
    %c0_i32_0 = arith.constant 0 : i32
    %c0_i32_1 = arith.constant 0 : i32
    return %c0_i32, %arg0, %c0_i32_0 : i32, i32, i32
  }
  func.func @transform_1(%arg0: i32) -> (i32, i32, i32) {
    %c0_i32 = arith.constant 0 : i32
    %c0_i32_0 = arith.constant 0 : i32
    %c0_i32_1 = arith.constant 0 : i32
    return %c0_i32, %arg0, %c0_i32_0 : i32, i32, i32
  }
  func.func @transform_2(%arg0: i32) -> (i32, i32) {
    %c0_i32 = arith.constant 0 : i32
    %c0_i32_0 = arith.constant 0 : i32
    %c0_i32_1 = arith.constant 0 : i32
    return %c0_i32, %c0_i32_0 : i32, i32
  }
  func.func @transform_3(%arg0: i32) -> (i32, i32) {
    %c0_i32 = arith.constant 0 : i32
    %c0_i32_0 = arith.constant 0 : i32
    %c0_i32_1 = arith.constant 0 : i32
    return %c0_i32, %c0_i32_0 : i32, i32
  }
  func.func @transform_4(%arg0: i32) -> (i32, i32) {
    %c0_i32 = arith.constant 0 : i32
    %c0_i32_0 = arith.constant 0 : i32
    %c0_i32_1 = arith.constant 0 : i32
    return %c0_i32, %c0_i32_0 : i32, i32
  }
  func.func @transform_5(%arg0: i32) -> (i32, i32) {
    %c0_i32 = arith.constant 0 : i32
    %c0_i32_0 = arith.constant 0 : i32
    %c0_i32_1 = arith.constant 0 : i32
    return %c0_i32, %c0_i32_0 : i32, i32
  }
  func.func @transform_6(%arg0: i32) -> (i32, i32) {
    %c0_i32 = arith.constant 0 : i32
    %c0_i32_0 = arith.constant 0 : i32
    %c0_i32_1 = arith.constant 0 : i32
    return %c0_i32, %c0_i32_0 : i32, i32
  }
  func.func @transform_7(%arg0: i32) -> (i32, i32) {
    %c0_i32 = arith.constant 0 : i32
    %c0_i32_0 = arith.constant 0 : i32
    %c0_i32_1 = arith.constant 0 : i32
    return %c0_i32, %c0_i32_0 : i32, i32
  }
  func.func @transform_8(%arg0: i32) -> (i32, i32, i32) {
    %c0_i32 = arith.constant 0 : i32
    %c0_i32_0 = arith.constant 0 : i32
    %c0_i32_1 = arith.constant 0 : i32
    return %c0_i32, %arg0, %c0_i32_0 : i32, i32, i32
  }
}

</mosaic_0001>

<llo_original>
// kernel: transformer_encoder_layer.1
$region0: #{transformer_encoder_layer.1}
  #allocation0 [shape = 'u32[]', space=smem, size = 0x4, offset = 0x4, fixed_abs, tag = 'smem constant byte address 0x4 - core index']
  #allocation1 [shape = 'u32[144,128]{1,0:T(1,128)}', space=vmem, size = 0x12000, scoped, tag = 'internal scratch']
  %s0 = inlined_call_operand.vmem [shape: f32[8,2,128], index: 0, kind: input, shape index: {}]
  %s1 = inlined_call_operand.hbm [shape: f32[8,2,128], index: 1, kind: input, shape index: {}]
  %s2 = inlined_call_operand.hbm [shape: bf16[128,256], index: 2, kind: input, shape index: {}]
  %s3 = inlined_call_operand.vmem [shape: bf16[128,128], index: 3, kind: input, shape index: {}]
  %s4 = inlined_call_operand.hbm [shape: bf16[128,128], index: 4, kind: input, shape index: {}]
  %s5 = inlined_call_operand.hbm [shape: bf16[128,256], index: 5, kind: input, shape index: {}]
  %s6 = inlined_call_operand.hbm [shape: bf16[256,128], index: 6, kind: input, shape index: {}]
  %s7 = inlined_call_operand.vmem [shape: f32[6,256], index: 7, kind: input, shape index: {}]
  %s8 = inlined_call_operand.hbm [shape: f32[8,2,128], index: 8, kind: output, shape index: {}]
  %s9 = sld [smem:[#allocation0]]
  $region62: #{transformer_encoder_layer.1} parent=0
    _
  %s11 = ssub.s32 1, %s9
  %s12 = scalar_select 0, %s11, %s9
  $region1: #{transformer_encoder_layer.1} parent=0
    #allocation2 [shape = 'u8[8192]{0}', space=vmem, size = 0x2000, scoped, tag = 'input window, operand 1, single buffered']
    #allocation3 [shape = 's32[1]{0}', space=sflag, size = 0x4, scoped, tag = 'scoped memory for transformer_encoder_layer.1']
    #allocation4 [shape = 's32[1]{0}', space=sflag, size = 0x4, scoped, tag = 'scoped memory for transformer_encoder_layer.1']
    #allocation5 [shape = 'u8[65536]{0}', space=vmem, size = 0x10000, scoped, tag = 'input window, operand 2, single buffered']
    #allocation6 [shape = 's32[1]{0}', space=sflag, size = 0x4, scoped, tag = 'scoped memory for transformer_encoder_layer.1']
    #allocation7 [shape = 'u8[32768]{0}', space=vmem, size = 0x8000, scoped, tag = 'input window, operand 4, single buffered']
    #allocation8 [shape = 'u8[65536]{0}', space=vmem, size = 0x10000, scoped, tag = 'input window, operand 5, single buffered']
    #allocation9 [shape = 's32[1]{0}', space=sflag, size = 0x4, scoped, tag = 'scoped memory for transformer_encoder_layer.1']
    #allocation10 [shape = 'u8[65536]{0}', space=vmem, size = 0x10000, scoped, tag = 'input window, operand 6, single buffered']
    #allocation11 [shape = 'u8[8192]{0}', space=vmem, size = 0x2000, scoped, tag = 'output window, operand 0, single buffered']
    %13 = vsyncpa [#allocation3], 0
    %14 = vsyncpa [#allocation6], 0
    %15 = vsyncpa [#allocation9], 0
    %16 = vsyncpa [#allocation4], 0
    // Predicated region
    $region2: #{transformer_encoder_layer.1} parent=1 // pred_check
      _
    $region3: #{transformer_encoder_layer.1} parent=1 // pred_check_branch
      %18 = sbr.rel (0) target = $region5
    $region4: #{transformer_encoder_layer.1} parent=1 // pred_region
      _
    $region5: #{transformer_encoder_layer.1} parent=1 // pred_fallthru
      _
    // Predicated region
    $region6: #{transformer_encoder_layer.1} parent=1 // pred_check
      _
    $region7: #{transformer_encoder_layer.1} parent=1 // pred_check_branch
      %20 = sbr.rel (0) target = $region9
    $region8: #{transformer_encoder_layer.1} parent=1 // pred_region
      %s22 = ssub.s32 256, 256
      %23 = vsyncadd [#allocation3], %s22
      %s24 = sshll.u32 [#allocation2], 4
      %s25 = int_to_ptr.vmem [resolvable:$true] %s24
      %30 = dma.hbm_to_vmem [thread:$0]  %s1, 256, %s25, [#allocation3], 32, 32, 2
    $region9: #{transformer_encoder_layer.1} parent=1 // pred_fallthru
      _
    // Predicated region
    $region10: #{transformer_encoder_layer.1} parent=1 // pred_check
      _
    $region11: #{transformer_encoder_layer.1} parent=1 // pred_check_branch
      %32 = sbr.rel (0) target = $region13
    $region12: #{transformer_encoder_layer.1} parent=1 // pred_region
      %s34 = ssub.s32 2048, 2048
      %35 = vsyncadd [#allocation6], %s34
      %s36 = sshll.u32 [#allocation5], 4
      %s37 = int_to_ptr.vmem [resolvable:$true] %s36
      %42 = dma.hbm_to_vmem [thread:$0]  %s2, 2048, %s37, [#allocation6], 128, 128, 8
    $region13: #{transformer_encoder_layer.1} parent=1 // pred_fallthru
      _
    // Predicated region
    $region14: #{transformer_encoder_layer.1} parent=1 // pred_check
      _
    $region15: #{transformer_encoder_layer.1} parent=1 // pred_check_branch
      %44 = sbr.rel (0) target = $region17
    $region16: #{transformer_encoder_layer.1} parent=1 // pred_region
      _
    $region17: #{transformer_encoder_layer.1} parent=1 // pred_fallthru
      _
    // Predicated region
    $region18: #{transformer_encoder_layer.1} parent=1 // pred_check
      _
    $region19: #{transformer_encoder_layer.1} parent=1 // pred_check_branch
      %46 = sbr.rel (0) target = $region21
    $region20: #{transformer_encoder_layer.1} parent=1 // pred_region
      %s48 = ssub.s32 1024, 1024
      %49 = vsyncadd [#allocation6], %s48
      %s50 = sshll.u32 [#allocation7], 4
      %s51 = int_to_ptr.vmem [resolvable:$true] %s50
      %56 = dma.hbm_to_vmem [thread:$0]  %s4, 1024, %s51, [#allocation6], 64, 64, 4
    $region21: #{transformer_encoder_layer.1} parent=1 // pred_fallthru
      _
    // Predicated region
    $region22: #{transformer_encoder_layer.1} parent=1 // pred_check
      _
    $region23: #{transformer_encoder_layer.1} parent=1 // pred_check_branch
      %58 = sbr.rel (0) target = $region25
    $region24: #{transformer_encoder_layer.1} parent=1 // pred_region
      %s60 = ssub.s32 2048, 2048
      %61 = vsyncadd [#allocation9], %s60
      %s62 = sshll.u32 [#allocation8], 4
      %s63 = int_to_ptr.vmem [resolvable:$true] %s62
      %68 = dma.hbm_to_vmem [thread:$0]  %s5, 2048, %s63, [#allocation9], 128, 128, 8
    $region25: #{transformer_encoder_layer.1} parent=1 // pred_fallthru
      _
    // Predicated region
    $region26: #{transformer_encoder_layer.1} parent=1 // pred_check
      _
    $region27: #{transformer_encoder_layer.1} parent=1 // pred_check_branch
      %70 = sbr.rel (0) target = $region29
    $region28: #{transformer_encoder_layer.1} parent=1 // pred_region
      %s72 = ssub.s32 2048, 2048
      %73 = vsyncadd [#allocation9], %s72
      %s74 = sshll.u32 [#allocation10], 4
      %s75 = int_to_ptr.vmem [resolvable:$true] %s74
      %80 = dma.hbm_to_vmem [thread:$0]  %s6, 2048, %s75, [#allocation9], 64, 64, 4
    $region29: #{transformer_encoder_layer.1} parent=1 // pred_fallthru
      _
    // Predicated region
    $region30: #{transformer_encoder_layer.1} parent=1 // pred_check
      _
    $region31: #{transformer_encoder_layer.1} parent=1 // pred_check_branch
      %82 = sbr.rel (0) target = $region33
    $region32: #{transformer_encoder_layer.1} parent=1 // pred_region
      _
    $region33: #{transformer_encoder_layer.1} parent=1 // pred_fallthru
      _
    // Predicated region
    $region34: #{transformer_encoder_layer.1} parent=1 // pred_check
      _
    $region35: #{transformer_encoder_layer.1} parent=1 // pred_check_branch
      %84 = sbr.rel (0) target = $region37
    $region36: #{transformer_encoder_layer.1} parent=1 // pred_region
      %85 = dma.done [#allocation3], 256
    $region37: #{transformer_encoder_layer.1} parent=1 // pred_fallthru
      _
    // Predicated region
    $region38: #{transformer_encoder_layer.1} parent=1 // pred_check
      _
    $region39: #{transformer_encoder_layer.1} parent=1 // pred_check_branch
      %87 = sbr.rel (0) target = $region41
    $region40: #{transformer_encoder_layer.1} parent=1 // pred_region
      %88 = dma.done [#allocation6], 2048
    $region41: #{transformer_encoder_layer.1} parent=1 // pred_fallthru
      _
    // Predicated region
    $region42: #{transformer_encoder_layer.1} parent=1 // pred_check
      _
    $region43: #{transformer_encoder_layer.1} parent=1 // pred_check_branch
      %90 = sbr.rel (0) target = $region45
    $region44: #{transformer_encoder_layer.1} parent=1 // pred_region
      %91 = dma.done [#allocation6], 1024
    $region45: #{transformer_encoder_layer.1} parent=1 // pred_fallthru
      _
    // Predicated region
    $region46: #{transformer_encoder_layer.1} parent=1 // pred_check
      _
    $region47: #{transformer_encoder_layer.1} parent=1 // pred_check_branch
      %93 = sbr.rel (0) target = $region49
    $region48: #{transformer_encoder_layer.1} parent=1 // pred_region
      %94 = dma.done [#allocation9], 2048
    $region49: #{transformer_encoder_layer.1} parent=1 // pred_fallthru
      _
    // Predicated region
    $region50: #{transformer_encoder_layer.1} parent=1 // pred_check
      _
    $region51: #{transformer_encoder_layer.1} parent=1 // pred_check_branch
      %96 = sbr.rel (0) target = $region53
    $region52: #{transformer_encoder_layer.1} parent=1 // pred_region
      %97 = dma.done [#allocation9], 2048
    $region53: #{transformer_encoder_layer.1} parent=1 // pred_fallthru
      _
    %v99 = vld [vmem:[%s7] sm:$0x3f]
    %v100 = vld [vmem:[%s7 + $0x8] sm:$0x3f]
    %v101 = vld [vmem:[%s0] sm:$0x3]
    %v102 = vld [vmem:[%s0 + $0x2] sm:$0x3]
    %v103 = vld [vmem:[%s0 + $0x4] sm:$0x3]
    %v104 = vld [vmem:[%s0 + $0x6] sm:$0x3]
    %v105 = vld [vmem:[%s0 + $0x8] sm:$0x3]
    %v106 = vld [vmem:[%s0 + $0xa] sm:$0x3]
    %v107 = vld [vmem:[%s0 + $0xc] sm:$0x3]
    %v108 = vld [vmem:[%s0 + $0xe] sm:$0x3]
    %v109 = vld [vmem:[#allocation2] sm:$0x3]
    %v110 = vld [vmem:[#allocation2 + $0x2] sm:$0x3]
    %v111 = vld [vmem:[#allocation2 + $0x4] sm:$0x3]
    %v112 = vld [vmem:[#allocation2 + $0x6] sm:$0x3]
    %v113 = vld [vmem:[#allocation2 + $0x8] sm:$0x3]
    %v114 = vld [vmem:[#allocation2 + $0xa] sm:$0x3]
    %v115 = vld [vmem:[#allocation2 + $0xc] sm:$0x3]
    %v116 = vld [vmem:[#allocation2 + $0xe] sm:$0x3]
    %v117 = vadd.f32 %v101, %v109
    %v118 = vadd.f32 %v102, %v110
    %v119 = vadd.f32 %v103, %v111
    %v120 = vadd.f32 %v104, %v112
    %v121 = vadd.f32 %v105, %v113
    %v122 = vadd.f32 %v106, %v114
    %v123 = vadd.f32 %v107, %v115
    %v124 = vadd.f32 %v108, %v116
    %v133 = vcombine.low %v117, %v118
    %v134 = vcombine.low %v119, %v120
    %v136 = vunpack.c.l.s4 1983009808
    %v137 = vunpack.c.0.s8 %v136
    %v138 = vlaneseq
    %v139 = vshrl.u32 %v138, 7
    %v140 = vsub.s32 %v137, %v139
    %v141 = vrot.slane %v133, %v140
    %v143 = vunpack.c.l.s4 1983009808
    %v144 = vunpack.c.0.s8 %v143
    %v145 = vlaneseq
    %v146 = vshrl.u32 %v145, 7
    %v147 = vsub.s32 %v144, %v146
    %v148 = vrot.slane %v134, %v147
    %v149 = vcombine.low %v141, %v148
    %v150 = vcombine.low %v121, %v122
    %v151 = vcombine.low %v123, %v124
    %v153 = vunpack.c.l.s4 1983009808
    %v154 = vunpack.c.0.s8 %v153
    %v155 = vlaneseq
    %v156 = vshrl.u32 %v155, 7
    %v157 = vsub.s32 %v154, %v156
    %v158 = vrot.slane %v150, %v157
    %v160 = vunpack.c.l.s4 1983009808
    %v161 = vunpack.c.0.s8 %v160
    %v162 = vlaneseq
    %v163 = vshrl.u32 %v162, 7
    %v164 = vsub.s32 %v161, %v163
    %v165 = vrot.slane %v151, %v164
    %v166 = vcombine.low %v158, %v165
    %v169 = vpack.c.bf16 %v166, %v149
    %v170 = vld [vmem:[#allocation5] sm:$0xff]
    %v171 = vld [vmem:[#allocation5 + $0x8] sm:$0xff]
    %v172 = vld [vmem:[#allocation5 + $0x10] sm:$0xff]
    %v173 = vld [vmem:[#allocation5 + $0x18] sm:$0xff]
    %v174 = vld [vmem:[#allocation5 + $0x20] sm:$0xff]
    %v175 = vld [vmem:[#allocation5 + $0x28] sm:$0xff]
    %v176 = vld [vmem:[#allocation5 + $0x30] sm:$0xff]
    %v177 = vld [vmem:[#allocation5 + $0x38] sm:$0xff]
    %v178 = vld [vmem:[#allocation5 + $0x40] sm:$0xff]
    %v179 = vld [vmem:[#allocation5 + $0x48] sm:$0xff]
    %v180 = vld [vmem:[#allocation5 + $0x50] sm:$0xff]
    %v181 = vld [vmem:[#allocation5 + $0x58] sm:$0xff]
    %v182 = vld [vmem:[#allocation5 + $0x60] sm:$0xff]
    %v183 = vld [vmem:[#allocation5 + $0x68] sm:$0xff]
    %v184 = vld [vmem:[#allocation5 + $0x70] sm:$0xff]
    %v185 = vld [vmem:[#allocation5 + $0x78] sm:$0xff]
    %v186 = vlaneseq
    %v187 = vshrl.u32 %v186, 7
    %v188 = vsub.s32 0, %v187
    %v189 = vrot.slane %v99, %v188
    %v190 = vlaneseq
    %v191 = vshrl.u32 %v190, 7
    %v192 = vsub.s32 0, %v191
    %v193 = vrot.slane %v100, %v192
    %v210 = vunpack.c.l.b16 %v170
    %v211 = vunpack.c.h.b16 %v170
    %v212 = vunpack.c.l.b16 %v171
    %v213 = vunpack.c.h.b16 %v171
    %v214 = vunpack.c.l.b16 %v172
    %v215 = vunpack.c.h.b16 %v172
    %v216 = vunpack.c.l.b16 %v173
    %v217 = vunpack.c.h.b16 %v173
    %v218 = vunpack.c.l.b16 %v174
    %v219 = vunpack.c.h.b16 %v174
    %v220 = vunpack.c.l.b16 %v175
    %v221 = vunpack.c.h.b16 %v175
    %v222 = vunpack.c.l.b16 %v176
    %v223 = vunpack.c.h.b16 %v176
    %v224 = vunpack.c.l.b16 %v177
    %v225 = vunpack.c.h.b16 %v177
    %v226 = vunpack.c.l.b16 %v178
    %v227 = vunpack.c.h.b16 %v178
    %v228 = vunpack.c.l.b16 %v179
    %v229 = vunpack.c.h.b16 %v179
    %v230 = vunpack.c.l.b16 %v180
    %v231 = vunpack.c.h.b16 %v180
    %v232 = vunpack.c.l.b16 %v181
    %v233 = vunpack.c.h.b16 %v181
    %v234 = vunpack.c.l.b16 %v182
    %v235 = vunpack.c.h.b16 %v182
    %v236 = vunpack.c.l.b16 %v183
    %v237 = vunpack.c.h.b16 %v183
    %v238 = vunpack.c.l.b16 %v184
    %v239 = vunpack.c.h.b16 %v184
    %v240 = vunpack.c.l.b16 %v185
    %v241 = vunpack.c.h.b16 %v185
    %v242 = vpack.c.b16 %v212, %v210
    %v243 = vpack.c.b16 %v213, %v211
    %v244 = vpack.c.b16 %v216, %v214
    %v245 = vpack.c.b16 %v217, %v215
    %v246 = vpack.c.b16 %v220, %v218
    %v247 = vpack.c.b16 %v221, %v219
    %v248 = vpack.c.b16 %v224, %v222
    %v249 = vpack.c.b16 %v225, %v223
    %v250 = vpack.c.b16 %v228, %v226
    %v251 = vpack.c.b16 %v229, %v227
    %v252 = vpack.c.b16 %v232, %v230
    %v253 = vpack.c.b16 %v233, %v231
    %v254 = vpack.c.b16 %v236, %v234
    %v255 = vpack.c.b16 %v237, %v235
    %v256 = vpack.c.b16 %v240, %v238
    %v257 = vpack.c.b16 %v241, %v239
    %274 = vmatprep.subr.bf16.mxu0 %v257
    %275 = vmatpush1.bf16.msra.mxu0 %v256
    %276 = vmatprep.subr.bf16.mxu0 %v255
    %277 = vmatpush1.bf16.msra.mxu0 %v254
    %278 = vmatprep.subr.bf16.mxu0 %v253
    %279 = vmatpush1.bf16.msra.mxu0 %v252
    %280 = vmatprep.subr.bf16.mxu0 %v251
    %281 = vmatpush1.bf16.msra.mxu0 %v250
    %282 = vmatprep.subr.bf16.mxu0 %v249
    %283 = vmatpush1.bf16.msra.mxu0 %v248
    %284 = vmatprep.subr.bf16.mxu0 %v247
    %285 = vmatpush1.bf16.msra.mxu0 %v246
    %286 = vmatprep.subr.bf16.mxu0 %v245
    %287 = vmatpush1.bf16.msra.mxu0 %v244
    %288 = vmatprep.subr.bf16.mxu0 %v243
    %289 = vmatpush1.bf16.msra.mxu0 %v242
    %290 = vmatprep.subr.bf16.mxu0 0
    %291 = vmatpush2.bf16.msra.mxu0 0
    %292 = vmatprep.subr.bf16.mxu0 0
    %293 = vmatpush2.bf16.msra.mxu0 0
    %294 = vmatprep.subr.bf16.mxu0 0
    %295 = vmatpush2.bf16.msra.mxu0 0
    %296 = vmatprep.subr.bf16.mxu0 0
    %297 = vmatpush2.bf16.msra.mxu0 0
    %298 = vmatprep.subr.bf16.mxu0 0
    %299 = vmatpush2.bf16.msra.mxu0 0
    %300 = vmatprep.subr.bf16.mxu0 0
    %301 = vmatpush2.bf16.msra.mxu0 0
    %302 = vmatprep.subr.bf16.mxu0 0
    %303 = vmatpush2.bf16.msra.mxu0 0
    %304 = vmatprep.subr.bf16.mxu0 0
    %305 = vmatpush2.bf16.msra.mxu0 0
    %306 = vmatprep.mubr.bf16.mxu0 0
    %307 = vmatmul.mubr.bf16.gmra.mxu0 %v169
    %v308 = vpop.f32.mrf.mxu0
    %v309 = vadd.f32 %v189, %v308
    %v310 = vpop.f32.mrf.mxu0
    %v311 = vadd.f32 %v193, %v310
    %v312 = vpop.f32.mrf.mxu0
    %v313 = vadd.f32 %v189, %v312
    %v314 = vpop.f32.mrf.mxu0
    %v315 = vadd.f32 %v193, %v314
    %316 = vdwg.mxu0
    %v325 = vcombine.low %v101, %v102
    %v326 = vcombine.low %v103, %v104
    %v328 = vunpack.c.l.s4 1983009808
    %v329 = vunpack.c.0.s8 %v328
    %v330 = vlaneseq
    %v331 = vshrl.u32 %v330, 7
    %v332 = vsub.s32 %v329, %v331
    %v333 = vrot.slane %v325, %v332
    %v335 = vunpack.c.l.s4 1983009808
    %v336 = vunpack.c.0.s8 %v335
    %v337 = vlaneseq
    %v338 = vshrl.u32 %v337, 7
    %v339 = vsub.s32 %v336, %v338
    %v340 = vrot.slane %v326, %v339
    %v341 = vcombine.low %v333, %v340
    %v342 = vcombine.low %v105, %v106
    %v343 = vcombine.low %v107, %v108
    %v345 = vunpack.c.l.s4 1983009808
    %v346 = vunpack.c.0.s8 %v345
    %v347 = vlaneseq
    %v348 = vshrl.u32 %v347, 7
    %v349 = vsub.s32 %v346, %v348
    %v350 = vrot.slane %v342, %v349
    %v352 = vunpack.c.l.s4 1983009808
    %v353 = vunpack.c.0.s8 %v352
    %v354 = vlaneseq
    %v355 = vshrl.u32 %v354, 7
    %v356 = vsub.s32 %v353, %v355
    %v357 = vrot.slane %v343, %v356
    %v358 = vcombine.low %v350, %v357
    %v361 = vpack.c.bf16 %v358, %v341
    %v362 = vld [vmem:[%s3] sm:$0xf]
    %v363 = vld [vmem:[%s3 + $0x4] sm:$0xf]
    %v364 = vld [vmem:[%s3 + $0x8] sm:$0xf]
    %v365 = vld [vmem:[%s3 + $0xc] sm:$0xf]
    %v366 = vld [vmem:[%s3 + $0x10] sm:$0xf]
    %v367 = vld [vmem:[%s3 + $0x14] sm:$0xf]
    %v368 = vld [vmem:[%s3 + $0x18] sm:$0xf]
    %v369 = vld [vmem:[%s3 + $0x1c] sm:$0xf]
    %v370 = vld [vmem:[%s3 + $0x20] sm:$0xf]
    %v371 = vld [vmem:[%s3 + $0x24] sm:$0xf]
    %v372 = vld [vmem:[%s3 + $0x28] sm:$0xf]
    %v373 = vld [vmem:[%s3 + $0x2c] sm:$0xf]
    %v374 = vld [vmem:[%s3 + $0x30] sm:$0xf]
    %v375 = vld [vmem:[%s3 + $0x34] sm:$0xf]
    %v376 = vld [vmem:[%s3 + $0x38] sm:$0xf]
    %v377 = vld [vmem:[%s3 + $0x3c] sm:$0xf]
    %v378 = vlaneseq
    %v379 = vshrl.u32 %v378, 7
    %v380 = vsub.s32 2, %v379
    %v381 = vrot.slane %v99, %v380
    %v398 = vunpack.c.l.b16 %v362
    %v399 = vunpack.c.l.b16 %v363
    %v400 = vunpack.c.l.b16 %v364
    %v401 = vunpack.c.l.b16 %v365
    %v402 = vunpack.c.l.b16 %v366
    %v403 = vunpack.c.l.b16 %v367
    %v404 = vunpack.c.l.b16 %v368
    %v405 = vunpack.c.l.b16 %v369
    %v406 = vunpack.c.l.b16 %v370
    %v407 = vunpack.c.l.b16 %v371
    %v408 = vunpack.c.l.b16 %v372
    %v409 = vunpack.c.l.b16 %v373
    %v410 = vunpack.c.l.b16 %v374
    %v411 = vunpack.c.l.b16 %v375
    %v412 = vunpack.c.l.b16 %v376
    %v413 = vunpack.c.l.b16 %v377
    %v414 = vpack.c.b16 %v399, %v398
    %v415 = vpack.c.b16 %v401, %v400
    %v416 = vpack.c.b16 %v403, %v402
    %v417 = vpack.c.b16 %v405, %v404
    %v418 = vpack.c.b16 %v407, %v406
    %v419 = vpack.c.b16 %v409, %v408
    %v420 = vpack.c.b16 %v411, %v410
    %v421 = vpack.c.b16 %v413, %v412
    %430 = vmatprep.subr.bf16.mxu0 0
    %431 = vmatpush1.bf16.msra.mxu0 %v421
    %432 = vmatprep.subr.bf16.mxu0 0
    %433 = vmatpush1.bf16.msra.mxu0 %v420
    %434 = vmatprep.subr.bf16.mxu0 0
    %435 = vmatpush1.bf16.msra.mxu0 %v419
    %436 = vmatprep.subr.bf16.mxu0 0
    %437 = vmatpush1.bf16.msra.mxu0 %v418
    %438 = vmatprep.subr.bf16.mxu0 0
    %439 = vmatpush1.bf16.msra.mxu0 %v417
    %440 = vmatprep.subr.bf16.mxu0 0
    %441 = vmatpush1.bf16.msra.mxu0 %v416
    %442 = vmatprep.subr.bf16.mxu0 0
    %443 = vmatpush1.bf16.msra.mxu0 %v415
    %444 = vmatprep.subr.bf16.mxu0 0
    %445 = vmatpush1.bf16.msra.mxu0 %v414
    %446 = vmatprep.subr.bf16.mxu0 0
    %447 = vmatpush2.bf16.msra.mxu0 0
    %448 = vmatprep.subr.bf16.mxu0 0
    %449 = vmatpush2.bf16.msra.mxu0 0
    %450 = vmatprep.subr.bf16.mxu0 0
    %451 = vmatpush2.bf16.msra.mxu0 0
    %452 = vmatprep.subr.bf16.mxu0 0
    %453 = vmatpush2.bf16.msra.mxu0 0
    %454 = vmatprep.subr.bf16.mxu0 0
    %455 = vmatpush2.bf16.msra.mxu0 0
    %456 = vmatprep.subr.bf16.mxu0 0
    %457 = vmatpush2.bf16.msra.mxu0 0
    %458 = vmatprep.subr.bf16.mxu0 0
    %459 = vmatpush2.bf16.msra.mxu0 0
    %460 = vmatprep.subr.bf16.mxu0 0
    %461 = vmatpush2.bf16.msra.mxu0 0
    %462 = vmatprep.mubr.bf16.mxu0 0
    %463 = vmatmul.mubr.bf16.gmra.mxu0 %v361
    %v464 = vpop.f32.mrf.mxu0
    %v465 = vadd.f32 %v381, %v464
    %v466 = vpop.f32.mrf.mxu0
    %v467 = vpop.f32.mrf.mxu0
    %v468 = vadd.f32 %v381, %v467
    %v469 = vpop.f32.mrf.mxu0
    %470 = vdwg.mxu0
    %v471 = vlaneseq
    %v472 = vshrl.u32 %v471, 7
    %v473 = vadd.s32 %v472, 8
    %vm474 = vcmp.lt.s32.totalorder %v472, 0
    %v475 = vsub.s32 0, %v472
    %v476 = vsel %vm474, %v475, %v472
    %v477 = vshrl.u32 %v476, 1
    %v478 = vand.u32 %v476, 1
    %v479 = vsub.s32 0, %v478
    %v480 = vsel %vm474, %v479, %v478
    %vm481 = vcmp.lt.s32.totalorder %v473, 0
    %v482 = vsub.s32 0, %v473
    %v483 = vsel %vm481, %v482, %v473
    %v484 = vshrl.u32 %v483, 1
    %v485 = vand.u32 %v483, 1
    %v486 = vsub.s32 0, %v485
    %v487 = vsel %vm481, %v486, %v485
    %vm488 = vcmp.ne.s32.totalorder %v480, 0
    %vm489 = vcmp.ne.s32.totalorder %v487, 0
    %vm490 = vcmp.lt.s32.totalorder %v480, 0
    %vm491 = vcmp.lt.s32.totalorder %v487, 0
    %vm492 = vmand %vm490, %vm488
    %vm493 = vmand %vm491, %vm489
    %v494 = vadd.s32 %v480, 2
    %v495 = vadd.s32 %v487, 2
    %v496 = vsel %vm492, %v494, %v480
    %v497 = vsel %vm493, %v495, %v487
    %v498 = vlaneseq
    %v499 = vand.u32 %v498, 127
    %vm500 = vcmp.lt.s32.totalorder %v499, 0
    %v501 = vsub.s32 0, %v499
    %v502 = vsel %vm500, %v501, %v499
    %v503 = vshrl.u32 %v502, 1
    %v504 = vand.u32 %v502, 1
    %v505 = vsub.s32 0, %v504
    %v506 = vsel %vm500, %v505, %v504
    %vm507 = vcmp.ne.s32.totalorder %v506, 0
    %vm508 = vcmp.lt.s32.totalorder %v506, 0
    %vm509 = vmand %vm508, %vm507
    %v510 = vadd.s32 %v506, 2
    %v511 = vsel %vm509, %v510, %v506
    %vm512 = vcmp.eq.s32.totalorder %v496, %v511
    %vm513 = vcmp.eq.s32.totalorder %v497, %v511
    %v514 = vsel %vm512, 0.0, -1e+30
    %v515 = vsel %vm513, 0.0, -1e+30
    %v516 = vpack.c.bf16 %v313, %v309
    %v517 = vpack.c.bf16 %v315, %v311
    %v518 = vpack.c.bf16 %v468, %v465
    %vm519 = vcmask 261120
    %v521 = vsel %vm519, %v516, 0
    %v524 = vsel %vm519, %v517, 0
    %526 = vmatprep.subr.bf16.mxu0 0
    %527 = vmatpush1.bf16.xpose.msra.mxu0 0
    %528 = vmatprep.subr.bf16.mxu0 0
    %529 = vmatpush1.bf16.xpose.msra.mxu0 0
    %530 = vmatprep.subr.bf16.mxu0 0
    %531 = vmatpush1.bf16.xpose.msra.mxu0 0
    %532 = vmatprep.subr.bf16.mxu0 0
    %533 = vmatpush1.bf16.xpose.msra.mxu0 0
    %534 = vmatprep.subr.bf16.mxu0 0
    %535 = vmatpush1.bf16.xpose.msra.mxu0 0
    %536 = vmatprep.subr.bf16.mxu0 0
    %537 = vmatpush1.bf16.xpose.msra.mxu0 0
    %538 = vmatprep.subr.bf16.mxu0 0
    %539 = vmatpush1.bf16.xpose.msra.mxu0 0
    %540 = vmatprep.subr.bf16.mxu0 0
    %541 = vmatpush1.bf16.xpose.msra.mxu0 %v524
    %542 = vmatprep.subr.bf16.mxu0 0
    %543 = vmatpush2.bf16.xpose.msra.mxu0 0
    %544 = vmatprep.subr.bf16.mxu0 0
    %545 = vmatpush2.bf16.xpose.msra.mxu0 0
    %546 = vmatprep.subr.bf16.mxu0 0
    %547 = vmatpush2.bf16.xpose.msra.mxu0 0
    %548 = vmatprep.subr.bf16.mxu0 0
    %549 = vmatpush2.bf16.xpose.msra.mxu0 0
    %550 = vmatprep.subr.bf16.mxu0 0
    %551 = vmatpush2.bf16.xpose.msra.mxu0 0
    %552 = vmatprep.subr.bf16.mxu0 0
    %553 = vmatpush2.bf16.xpose.msra.mxu0 0
    %554 = vmatprep.subr.bf16.mxu0 0
    %555 = vmatpush2.bf16.xpose.msra.mxu0 0
    %556 = vmatprep.subr.bf16.mxu0 0
    %557 = vmatpush2.bf16.xpose.msra.mxu0 0
    %558 = vmatprep.mubr.bf16.mxu0 0
    %559 = vmatmul.mubr.bf16.gmra.mxu0 %v521
    %v560 = vpop.f32.mrf.mxu0
    %v561 = vadd.f32 0.0, %v560
    %v562 = vpop.f32.mrf.mxu0
    %v563 = vpop.f32.mrf.mxu0
    %v564 = vadd.f32 0.0, %v563
    %v565 = vpop.f32.mrf.mxu0
    %566 = vdwg.mxu0
    %v567 = vmul.f32 %v561, 0.17677669
    %v568 = vmul.f32 %v564, 0.17677669
    %v569 = vadd.f32 %v567, %v514
    %v570 = vadd.f32 %v568, %v515
    %vm571 = vcmask 130048
    %v572 = vsel %vm571, %v569, -inf
    %573 = vmax.xlane.f32.xlu0 %v572
    %v574 = vpop.xlane.xlu0 %573
    %v575 = vsel %vm571, %v570, -inf
    %576 = vmax.xlane.f32.xlu0 %v575
    %v577 = vpop.xlane.xlu0 %576
    %v578 = vsub.f32 %v569, %v574
    %v579 = vsub.f32 %v570, %v577
    %v580 = vmul.f32 %v578, 1.442695
    %v581 = vpow.pop %v580
    %v582 = vmul.f32 %v579, 1.442695
    %v583 = vpow.pop %v582
    %v584 = vsel %vm571, %v581, 0.0
    %585 = vadd.xlane.f32.xlu0 %v584
    %v586 = vpop.xlane.xlu0 %585
    %v587 = vsel %vm571, %v583, 0.0
    %588 = vadd.xlane.f32.xlu0 %v587
    %v589 = vpop.xlane.xlu0 %588
    %v590 = vrcp.pop %v586
    %v591 = vrcp.pop %v589
    %v592 = vmul.f32 %v581, %v590
    %v593 = vmul.f32 %v583, %v591
    %v594 = vpack.c.bf16 %v593, %v592
    %v596 = vsel %vm571, %v594, 0
    %598 = vmatprep.subr.bf16.mxu0 0
    %599 = vmatpush1.bf16.msra.mxu0 0
    %600 = vmatprep.subr.bf16.mxu0 0
    %601 = vmatpush1.bf16.msra.mxu0 0
    %602 = vmatprep.subr.bf16.mxu0 0
    %603 = vmatpush1.bf16.msra.mxu0 0
    %604 = vmatprep.subr.bf16.mxu0 0
    %605 = vmatpush1.bf16.msra.mxu0 0
    %606 = vmatprep.subr.bf16.mxu0 0
    %607 = vmatpush1.bf16.msra.mxu0 0
    %608 = vmatprep.subr.bf16.mxu0 0
    %609 = vmatpush1.bf16.msra.mxu0 0
    %610 = vmatprep.subr.bf16.mxu0 0
    %611 = vmatpush1.bf16.msra.mxu0 0
    %612 = vmatprep.subr.bf16.mxu0 0
    %613 = vmatpush1.bf16.msra.mxu0 %v518
    %614 = vmatprep.subr.bf16.mxu0 0
    %615 = vmatpush2.bf16.msra.mxu0 0
    %616 = vmatprep.subr.bf16.mxu0 0
    %617 = vmatpush2.bf16.msra.mxu0 0
    %618 = vmatprep.subr.bf16.mxu0 0
    %619 = vmatpush2.bf16.msra.mxu0 0
    %620 = vmatprep.subr.bf16.mxu0 0
    %621 = vmatpush2.bf16.msra.mxu0 0
    %622 = vmatprep.subr.bf16.mxu0 0
    %623 = vmatpush2.bf16.msra.mxu0 0
    %624 = vmatprep.subr.bf16.mxu0 0
    %625 = vmatpush2.bf16.msra.mxu0 0
    %626 = vmatprep.subr.bf16.mxu0 0
    %627 = vmatpush2.bf16.msra.mxu0 0
    %628 = vmatprep.subr.bf16.mxu0 0
    %629 = vmatpush2.bf16.msra.mxu0 0
    %630 = vmatprep.mubr.bf16.mxu0 0
    %631 = vmatmul.mubr.bf16.gmra.mxu0 %v596
    %v632 = vpop.f32.mrf.mxu0
    %v633 = vadd.f32 0.0, %v632
    %v634 = vpop.f32.mrf.mxu0
    %v635 = vpop.f32.mrf.mxu0
    %v636 = vadd.f32 0.0, %v635
    %v637 = vpop.f32.mrf.mxu0
    %638 = vdwg.mxu0
    %640 = vrot.lane.b32.xlu0 %v516, 96
    %v641 = vpop.permute.xlu0 %640
    %643 = vrot.lane.b32.xlu0 %v517, 96
    %v644 = vpop.permute.xlu0 %643
    %v646 = vsel %vm519, %v641, 0
    %v649 = vsel %vm519, %v644, 0
    %651 = vmatprep.subr.bf16.mxu0 0
    %652 = vmatpush1.bf16.xpose.msra.mxu0 0
    %653 = vmatprep.subr.bf16.mxu0 0
    %654 = vmatpush1.bf16.xpose.msra.mxu0 0
    %655 = vmatprep.subr.bf16.mxu0 0
    %656 = vmatpush1.bf16.xpose.msra.mxu0 0
    %657 = vmatprep.subr.bf16.mxu0 0
    %658 = vmatpush1.bf16.xpose.msra.mxu0 0
    %659 = vmatprep.subr.bf16.mxu0 0
    %660 = vmatpush1.bf16.xpose.msra.mxu0 0
    %661 = vmatprep.subr.bf16.mxu0 0
    %662 = vmatpush1.bf16.xpose.msra.mxu0 0
    %663 = vmatprep.subr.bf16.mxu0 0
    %664 = vmatpush1.bf16.xpose.msra.mxu0 0
    %665 = vmatprep.subr.bf16.mxu0 0
    %666 = vmatpush1.bf16.xpose.msra.mxu0 %v649
    %667 = vmatprep.subr.bf16.mxu0 0
    %668 = vmatpush2.bf16.xpose.msra.mxu0 0
    %669 = vmatprep.subr.bf16.mxu0 0
    %670 = vmatpush2.bf16.xpose.msra.mxu0 0
    %671 = vmatprep.subr.bf16.mxu0 0
    %672 = vmatpush2.bf16.xpose.msra.mxu0 0
    %673 = vmatprep.subr.bf16.mxu0 0
    %674 = vmatpush2.bf16.xpose.msra.mxu0 0
    %675 = vmatprep.subr.bf16.mxu0 0
    %676 = vmatpush2.bf16.xpose.msra.mxu0 0
    %677 = vmatprep.subr.bf16.mxu0 0
    %678 = vmatpush2.bf16.xpose.msra.mxu0 0
    %679 = vmatprep.subr.bf16.mxu0 0
    %680 = vmatpush2.bf16.xpose.msra.mxu0 0
    %681 = vmatprep.subr.bf16.mxu0 0
    %682 = vmatpush2.bf16.xpose.msra.mxu0 0
    %683 = vmatprep.mubr.bf16.mxu0 0
    %684 = vmatmul.mubr.bf16.gmra.mxu0 %v646
    %v685 = vpop.f32.mrf.mxu0
    %v686 = vadd.f32 0.0, %v685
    %v687 = vpop.f32.mrf.mxu0
    %v688 = vpop.f32.mrf.mxu0
    %v689 = vadd.f32 0.0, %v688
    %v690 = vpop.f32.mrf.mxu0
    %691 = vdwg.mxu0
    %v692 = vmul.f32 %v686, 0.17677669
    %v693 = vmul.f32 %v689, 0.17677669
    %v694 = vadd.f32 %v692, %v514
    %v695 = vadd.f32 %v693, %v515
    %v696 = vsel %vm571, %v694, -inf
    %697 = vmax.xlane.f32.xlu0 %v696
    %v698 = vpop.xlane.xlu0 %697
    %v699 = vsel %vm571, %v695, -inf
    %700 = vmax.xlane.f32.xlu0 %v699
    %v701 = vpop.xlane.xlu0 %700
    %v702 = vsub.f32 %v694, %v698
    %v703 = vsub.f32 %v695, %v701
    %v704 = vmul.f32 %v702, 1.442695
    %v705 = vpow.pop %v704
    %v706 = vmul.f32 %v703, 1.442695
    %v707 = vpow.pop %v706
    %v708 = vsel %vm571, %v705, 0.0
    %709 = vadd.xlane.f32.xlu0 %v708
    %v710 = vpop.xlane.xlu0 %709
    %v711 = vsel %vm571, %v707, 0.0
    %712 = vadd.xlane.f32.xlu0 %v711
    %v713 = vpop.xlane.xlu0 %712
    %v714 = vrcp.pop %v710
    %v715 = vrcp.pop %v713
    %v716 = vmul.f32 %v705, %v714
    %v717 = vmul.f32 %v707, %v715
    %v718 = vpack.c.bf16 %v717, %v716
    %720 = vrot.lane.b32.xlu0 %v518, 96
    %v721 = vpop.permute.xlu0 %720
    %v724 = vsel %vm571, %v718, 0
    %726 = vmatprep.subr.bf16.mxu0 0
    %727 = vmatpush1.bf16.msra.mxu0 0
    %728 = vmatprep.subr.bf16.mxu0 0
    %729 = vmatpush1.bf16.msra.mxu0 0
    %730 = vmatprep.subr.bf16.mxu0 0
    %731 = vmatpush1.bf16.msra.mxu0 0
    %732 = vmatprep.subr.bf16.mxu0 0
    %733 = vmatpush1.bf16.msra.mxu0 0
    %734 = vmatprep.subr.bf16.mxu0 0
    %735 = vmatpush1.bf16.msra.mxu0 0
    %736 = vmatprep.subr.bf16.mxu0 0
    %737 = vmatpush1.bf16.msra.mxu0 0
    %738 = vmatprep.subr.bf16.mxu0 0
    %739 = vmatpush1.bf16.msra.mxu0 0
    %740 = vmatprep.subr.bf16.mxu0 0
    %741 = vmatpush1.bf16.msra.mxu0 %v721
    %742 = vmatprep.subr.bf16.mxu0 0
    %743 = vmatpush2.bf16.msra.mxu0 0
    %744 = vmatprep.subr.bf16.mxu0 0
    %745 = vmatpush2.bf16.msra.mxu0 0
    %746 = vmatprep.subr.bf16.mxu0 0
    %747 = vmatpush2.bf16.msra.mxu0 0
    %748 = vmatprep.subr.bf16.mxu0 0
    %749 = vmatpush2.bf16.msra.mxu0 0
    %750 = vmatprep.subr.bf16.mxu0 0
    %751 = vmatpush2.bf16.msra.mxu0 0
    %752 = vmatprep.subr.bf16.mxu0 0
    %753 = vmatpush2.bf16.msra.mxu0 0
    %754 = vmatprep.subr.bf16.mxu0 0
    %755 = vmatpush2.bf16.msra.mxu0 0
    %756 = vmatprep.subr.bf16.mxu0 0
    %757 = vmatpush2.bf16.msra.mxu0 0
    %758 = vmatprep.mubr.bf16.mxu0 0
    %759 = vmatmul.mubr.bf16.gmra.mxu0 %v724
    %v760 = vpop.f32.mrf.mxu0
    %v761 = vadd.f32 0.0, %v760
    %v762 = vpop.f32.mrf.mxu0
    %v763 = vpop.f32.mrf.mxu0
    %v764 = vadd.f32 0.0, %v763
    %v765 = vpop.f32.mrf.mxu0
    %766 = vdwg.mxu0
    %767 = vrot.lane.b32.xlu0 %v516, 64
    %v768 = vpop.permute.xlu0 %767
    %769 = vrot.lane.b32.xlu0 %v517, 64
    %v770 = vpop.permute.xlu0 %769
    %v772 = vsel %vm519, %v768, 0
    %v775 = vsel %vm519, %v770, 0
    %777 = vmatprep.subr.bf16.mxu0 0
    %778 = vmatpush1.bf16.xpose.msra.mxu0 0
    %779 = vmatprep.subr.bf16.mxu0 0
    %780 = vmatpush1.bf16.xpose.msra.mxu0 0
    %781 = vmatprep.subr.bf16.mxu0 0
    %782 = vmatpush1.bf16.xpose.msra.mxu0 0
    %783 = vmatprep.subr.bf16.mxu0 0
    %784 = vmatpush1.bf16.xpose.msra.mxu0 0
    %785 = vmatprep.subr.bf16.mxu0 0
    %786 = vmatpush1.bf16.xpose.msra.mxu0 0
    %787 = vmatprep.subr.bf16.mxu0 0
    %788 = vmatpush1.bf16.xpose.msra.mxu0 0
    %789 = vmatprep.subr.bf16.mxu0 0
    %790 = vmatpush1.bf16.xpose.msra.mxu0 0
    %791 = vmatprep.subr.bf16.mxu0 0
    %792 = vmatpush1.bf16.xpose.msra.mxu0 %v775
    %793 = vmatprep.subr.bf16.mxu0 0
    %794 = vmatpush2.bf16.xpose.msra.mxu0 0
    %795 = vmatprep.subr.bf16.mxu0 0
    %796 = vmatpush2.bf16.xpose.msra.mxu0 0
    %797 = vmatprep.subr.bf16.mxu0 0
    %798 = vmatpush2.bf16.xpose.msra.mxu0 0
    %799 = vmatprep.subr.bf16.mxu0 0
    %800 = vmatpush2.bf16.xpose.msra.mxu0 0
    %801 = vmatprep.subr.bf16.mxu0 0
    %802 = vmatpush2.bf16.xpose.msra.mxu0 0
    %803 = vmatprep.subr.bf16.mxu0 0
    %804 = vmatpush2.bf16.xpose.msra.mxu0 0
    %805 = vmatprep.subr.bf16.mxu0 0
    %806 = vmatpush2.bf16.xpose.msra.mxu0 0
    %807 = vmatprep.subr.bf16.mxu0 0
    %808 = vmatpush2.bf16.xpose.msra.mxu0 0
    %809 = vmatprep.mubr.bf16.mxu0 0
    %810 = vmatmul.mubr.bf16.gmra.mxu0 %v772
    %v811 = vpop.f32.mrf.mxu0
    %v812 = vadd.f32 0.0, %v811
    %v813 = vpop.f32.mrf.mxu0
    %v814 = vpop.f32.mrf.mxu0
    %v815 = vadd.f32 0.0, %v814
    %v816 = vpop.f32.mrf.mxu0
    %817 = vdwg.mxu0
    %v818 = vmul.f32 %v812, 0.17677669
    %v819 = vmul.f32 %v815, 0.17677669
    %v820 = vadd.f32 %v818, %v514
    %v821 = vadd.f32 %v819, %v515
    %v822 = vsel %vm571, %v820, -inf
    %823 = vmax.xlane.f32.xlu0 %v822
    %v824 = vpop.xlane.xlu0 %823
    %v825 = vsel %vm571, %v821, -inf
    %826 = vmax.xlane.f32.xlu0 %v825
    %v827 = vpop.xlane.xlu0 %826
    %v828 = vsub.f32 %v820, %v824
    %v829 = vsub.f32 %v821, %v827
    %v830 = vmul.f32 %v828, 1.442695
    %v831 = vpow.pop %v830
    %v832 = vmul.f32 %v829, 1.442695
    %v833 = vpow.pop %v832
    %v834 = vsel %vm571, %v831, 0.0
    %835 = vadd.xlane.f32.xlu0 %v834
    %v836 = vpop.xlane.xlu0 %835
    %v837 = vsel %vm571, %v833, 0.0
    %838 = vadd.xlane.f32.xlu0 %v837
    %v839 = vpop.xlane.xlu0 %838
    %v840 = vrcp.pop %v836
    %v841 = vrcp.pop %v839
    %v842 = vmul.f32 %v831, %v840
    %v843 = vmul.f32 %v833, %v841
    %v844 = vpack.c.bf16 %v843, %v842
    %845 = vrot.lane.b32.xlu0 %v518, 64
    %v846 = vpop.permute.xlu0 %845
    %v849 = vsel %vm571, %v844, 0
    %851 = vmatprep.subr.bf16.mxu0 0
    %852 = vmatpush1.bf16.msra.mxu0 0
    %853 = vmatprep.subr.bf16.mxu0 0
    %854 = vmatpush1.bf16.msra.mxu0 0
    %855 = vmatprep.subr.bf16.mxu0 0
    %856 = vmatpush1.bf16.msra.mxu0 0
    %857 = vmatprep.subr.bf16.mxu0 0
    %858 = vmatpush1.bf16.msra.mxu0 0
    %859 = vmatprep.subr.bf16.mxu0 0
    %860 = vmatpush1.bf16.msra.mxu0 0
    %861 = vmatprep.subr.bf16.mxu0 0
    %862 = vmatpush1.bf16.msra.mxu0 0
    %863 = vmatprep.subr.bf16.mxu0 0
    %864 = vmatpush1.bf16.msra.mxu0 0
    %865 = vmatprep.subr.bf16.mxu0 0
    %866 = vmatpush1.bf16.msra.mxu0 %v846
    %867 = vmatprep.subr.bf16.mxu0 0
    %868 = vmatpush2.bf16.msra.mxu0 0
    %869 = vmatprep.subr.bf16.mxu0 0
    %870 = vmatpush2.bf16.msra.mxu0 0
    %871 = vmatprep.subr.bf16.mxu0 0
    %872 = vmatpush2.bf16.msra.mxu0 0
    %873 = vmatprep.subr.bf16.mxu0 0
    %874 = vmatpush2.bf16.msra.mxu0 0
    %875 = vmatprep.subr.bf16.mxu0 0
    %876 = vmatpush2.bf16.msra.mxu0 0
    %877 = vmatprep.subr.bf16.mxu0 0
    %878 = vmatpush2.bf16.msra.mxu0 0
    %879 = vmatprep.subr.bf16.mxu0 0
    %880 = vmatpush2.bf16.msra.mxu0 0
    %881 = vmatprep.subr.bf16.mxu0 0
    %882 = vmatpush2.bf16.msra.mxu0 0
    %883 = vmatprep.mubr.bf16.mxu0 0
    %884 = vmatmul.mubr.bf16.gmra.mxu0 %v849
    %v885 = vpop.f32.mrf.mxu0
    %v886 = vadd.f32 0.0, %v885
    %v887 = vpop.f32.mrf.mxu0
    %v888 = vpop.f32.mrf.mxu0
    %v889 = vadd.f32 0.0, %v888
    %v890 = vpop.f32.mrf.mxu0
    %891 = vdwg.mxu0
    %892 = vrot.lane.b32.xlu0 %v516, 32
    %v893 = vpop.permute.xlu0 %892
    %894 = vrot.lane.b32.xlu0 %v517, 32
    %v895 = vpop.permute.xlu0 %894
    %v897 = vsel %vm519, %v893, 0
    %v900 = vsel %vm519, %v895, 0
    %902 = vmatprep.subr.bf16.mxu0 0
    %903 = vmatpush1.bf16.xpose.msra.mxu0 0
    %904 = vmatprep.subr.bf16.mxu0 0
    %905 = vmatpush1.bf16.xpose.msra.mxu0 0
    %906 = vmatprep.subr.bf16.mxu0 0
    %907 = vmatpush1.bf16.xpose.msra.mxu0 0
    %908 = vmatprep.subr.bf16.mxu0 0
    %909 = vmatpush1.bf16.xpose.msra.mxu0 0
    %910 = vmatprep.subr.bf16.mxu0 0
    %911 = vmatpush1.bf16.xpose.msra.mxu0 0
    %912 = vmatprep.subr.bf16.mxu0 0
    %913 = vmatpush1.bf16.xpose.msra.mxu0 0
    %914 = vmatprep.subr.bf16.mxu0 0
    %915 = vmatpush1.bf16.xpose.msra.mxu0 0
    %916 = vmatprep.subr.bf16.mxu0 0
    %917 = vmatpush1.bf16.xpose.msra.mxu0 %v900
    %918 = vmatprep.subr.bf16.mxu0 0
    %919 = vmatpush2.bf16.xpose.msra.mxu0 0
    %920 = vmatprep.subr.bf16.mxu0 0
    %921 = vmatpush2.bf16.xpose.msra.mxu0 0
    %922 = vmatprep.subr.bf16.mxu0 0
    %923 = vmatpush2.bf16.xpose.msra.mxu0 0
    %924 = vmatprep.subr.bf16.mxu0 0
    %925 = vmatpush2.bf16.xpose.msra.mxu0 0
    %926 = vmatprep.subr.bf16.mxu0 0
    %927 = vmatpush2.bf16.xpose.msra.mxu0 0
    %928 = vmatprep.subr.bf16.mxu0 0
    %929 = vmatpush2.bf16.xpose.msra.mxu0 0
    %930 = vmatprep.subr.bf16.mxu0 0
    %931 = vmatpush2.bf16.xpose.msra.mxu0 0
    %932 = vmatprep.subr.bf16.mxu0 0
    %933 = vmatpush2.bf16.xpose.msra.mxu0 0
    %934 = vmatprep.mubr.bf16.mxu0 0
    %935 = vmatmul.mubr.bf16.gmra.mxu0 %v897
    %v936 = vpop.f32.mrf.mxu0
    %v937 = vadd.f32 0.0, %v936
    %v938 = vpop.f32.mrf.mxu0
    %v939 = vpop.f32.mrf.mxu0
    %v940 = vadd.f32 0.0, %v939
    %v941 = vpop.f32.mrf.mxu0
    %942 = vdwg.mxu0
    %v943 = vmul.f32 %v937, 0.17677669
    %v944 = vmul.f32 %v940, 0.17677669
    %v945 = vadd.f32 %v943, %v514
    %v946 = vadd.f32 %v944, %v515
    %v947 = vsel %vm571, %v945, -inf
    %948 = vmax.xlane.f32.xlu0 %v947
    %v949 = vpop.xlane.xlu0 %948
    %v950 = vsel %vm571, %v946, -inf
    %951 = vmax.xlane.f32.xlu0 %v950
    %v952 = vpop.xlane.xlu0 %951
    %v953 = vsub.f32 %v945, %v949
    %v954 = vsub.f32 %v946, %v952
    %v955 = vmul.f32 %v953, 1.442695
    %v956 = vpow.pop %v955
    %v957 = vmul.f32 %v954, 1.442695
    %v958 = vpow.pop %v957
    %v959 = vsel %vm571, %v956, 0.0
    %960 = vadd.xlane.f32.xlu0 %v959
    %v961 = vpop.xlane.xlu0 %960
    %v962 = vsel %vm571, %v958, 0.0
    %963 = vadd.xlane.f32.xlu0 %v962
    %v964 = vpop.xlane.xlu0 %963
    %v965 = vrcp.pop %v961
    %v966 = vrcp.pop %v964
    %v967 = vmul.f32 %v956, %v965
    %v968 = vmul.f32 %v958, %v966
    %v969 = vpack.c.bf16 %v968, %v967
    %970 = vrot.lane.b32.xlu0 %v518, 32
    %v971 = vpop.permute.xlu0 %970
    %v974 = vsel %vm571, %v969, 0
    %976 = vmatprep.subr.bf16.mxu0 0
    %977 = vmatpush1.bf16.msra.mxu0 0
    %978 = vmatprep.subr.bf16.mxu0 0
    %979 = vmatpush1.bf16.msra.mxu0 0
    %980 = vmatprep.subr.bf16.mxu0 0
    %981 = vmatpush1.bf16.msra.mxu0 0
    %982 = vmatprep.subr.bf16.mxu0 0
    %983 = vmatpush1.bf16.msra.mxu0 0
    %984 = vmatprep.subr.bf16.mxu0 0
    %985 = vmatpush1.bf16.msra.mxu0 0
    %986 = vmatprep.subr.bf16.mxu0 0
    %987 = vmatpush1.bf16.msra.mxu0 0
    %988 = vmatprep.subr.bf16.mxu0 0
    %989 = vmatpush1.bf16.msra.mxu0 0
    %990 = vmatprep.subr.bf16.mxu0 0
    %991 = vmatpush1.bf16.msra.mxu0 %v971
    %992 = vmatprep.subr.bf16.mxu0 0
    %993 = vmatpush2.bf16.msra.mxu0 0
    %994 = vmatprep.subr.bf16.mxu0 0
    %995 = vmatpush2.bf16.msra.mxu0 0
    %996 = vmatprep.subr.bf16.mxu0 0
    %997 = vmatpush2.bf16.msra.mxu0 0
    %998 = vmatprep.subr.bf16.mxu0 0
    %999 = vmatpush2.bf16.msra.mxu0 0
    %1000 = vmatprep.subr.bf16.mxu0 0
    %1001 = vmatpush2.bf16.msra.mxu0 0
    %1002 = vmatprep.subr.bf16.mxu0 0
    %1003 = vmatpush2.bf16.msra.mxu0 0
    %1004 = vmatprep.subr.bf16.mxu0 0
    %1005 = vmatpush2.bf16.msra.mxu0 0
    %1006 = vmatprep.subr.bf16.mxu0 0
    %1007 = vmatpush2.bf16.msra.mxu0 0
    %1008 = vmatprep.mubr.bf16.mxu0 0
    %1009 = vmatmul.mubr.bf16.gmra.mxu0 %v974
    %v1010 = vpop.f32.mrf.mxu0
    %v1011 = vadd.f32 0.0, %v1010
    %v1012 = vpop.f32.mrf.mxu0
    %v1013 = vpop.f32.mrf.mxu0
    %v1014 = vadd.f32 0.0, %v1013
    %v1015 = vpop.f32.mrf.mxu0
    %1016 = vdwg.mxu0
    %1019 = vrot.lane.b32.xlu0 %v761, 32
    %v1020 = vpop.permute.xlu0 %1019
    %1021 = vrot.lane.b32.xlu0 %v764, 32
    %v1022 = vpop.permute.xlu0 %1021
    %1027 = vrot.lane.b32.xlu0 %v886, 64
    %v1028 = vpop.permute.xlu0 %1027
    %1029 = vrot.lane.b32.xlu0 %v889, 64
    %v1030 = vpop.permute.xlu0 %1029
    %1035 = vrot.lane.b32.xlu0 %v1011, 96
    %v1036 = vpop.permute.xlu0 %1035
    %1037 = vrot.lane.b32.xlu0 %v1014, 96
    %v1038 = vpop.permute.xlu0 %1037
    %v1041 = vsel %vm519, %v633, %v1020
    %v1042 = vsel %vm519, %v636, %v1022
    %vm1043 = vcmask 523264
    %v1044 = vsel %vm1043, %v1041, %v1028
    %v1045 = vsel %vm1043, %v1042, %v1030
    %vm1046 = vcmask 785408
    %v1047 = vsel %vm1046, %v1044, %v1036
    %v1048 = vsel %vm1046, %v1045, %v1038
    %v1049 = vpack.c.bf16 %v1048, %v1047
    %v1050 = vld [vmem:[#allocation7] sm:$0xf]
    %v1051 = vld [vmem:[#allocation7 + $0x4] sm:$0xf]
    %v1052 = vld [vmem:[#allocation7 + $0x8] sm:$0xf]
    %v1053 = vld [vmem:[#allocation7 + $0xc] sm:$0xf]
    %v1054 = vld [vmem:[#allocation7 + $0x10] sm:$0xf]
    %v1055 = vld [vmem:[#allocation7 + $0x14] sm:$0xf]
    %v1056 = vld [vmem:[#allocation7 + $0x18] sm:$0xf]
    %v1057 = vld [vmem:[#allocation7 + $0x1c] sm:$0xf]
    %v1058 = vld [vmem:[#allocation7 + $0x20] sm:$0xf]
    %v1059 = vld [vmem:[#allocation7 + $0x24] sm:$0xf]
    %v1060 = vld [vmem:[#allocation7 + $0x28] sm:$0xf]
    %v1061 = vld [vmem:[#allocation7 + $0x2c] sm:$0xf]
    %v1062 = vld [vmem:[#allocation7 + $0x30] sm:$0xf]
    %v1063 = vld [vmem:[#allocation7 + $0x34] sm:$0xf]
    %v1064 = vld [vmem:[#allocation7 + $0x38] sm:$0xf]
    %v1065 = vld [vmem:[#allocation7 + $0x3c] sm:$0xf]
    %v1066 = vlaneseq
    %v1067 = vshrl.u32 %v1066, 7
    %v1068 = vsub.s32 2, %v1067
    %v1069 = vrot.slane %v100, %v1068
    %v1086 = vunpack.c.l.b16 %v1050
    %v1087 = vunpack.c.l.b16 %v1051
    %v1088 = vunpack.c.l.b16 %v1052
    %v1089 = vunpack.c.l.b16 %v1053
    %v1090 = vunpack.c.l.b16 %v1054
    %v1091 = vunpack.c.l.b16 %v1055
    %v1092 = vunpack.c.l.b16 %v1056
    %v1093 = vunpack.c.l.b16 %v1057
    %v1094 = vunpack.c.l.b16 %v1058
    %v1095 = vunpack.c.l.b16 %v1059
    %v1096 = vunpack.c.l.b16 %v1060
    %v1097 = vunpack.c.l.b16 %v1061
    %v1098 = vunpack.c.l.b16 %v1062
    %v1099 = vunpack.c.l.b16 %v1063
    %v1100 = vunpack.c.l.b16 %v1064
    %v1101 = vunpack.c.l.b16 %v1065
    %v1102 = vpack.c.b16 %v1087, %v1086
    %v1103 = vpack.c.b16 %v1089, %v1088
    %v1104 = vpack.c.b16 %v1091, %v1090
    %v1105 = vpack.c.b16 %v1093, %v1092
    %v1106 = vpack.c.b16 %v1095, %v1094
    %v1107 = vpack.c.b16 %v1097, %v1096
    %v1108 = vpack.c.b16 %v1099, %v1098
    %v1109 = vpack.c.b16 %v1101, %v1100
    %1118 = vmatprep.subr.bf16.mxu0 0
    %1119 = vmatpush1.bf16.msra.mxu0 %v1109
    %1120 = vmatprep.subr.bf16.mxu0 0
    %1121 = vmatpush1.bf16.msra.mxu0 %v1108
    %1122 = vmatprep.subr.bf16.mxu0 0
    %1123 = vmatpush1.bf16.msra.mxu0 %v1107
    %1124 = vmatprep.subr.bf16.mxu0 0
    %1125 = vmatpush1.bf16.msra.mxu0 %v1106
    %1126 = vmatprep.subr.bf16.mxu0 0
    %1127 = vmatpush1.bf16.msra.mxu0 %v1105
    %1128 = vmatprep.subr.bf16.mxu0 0
    %1129 = vmatpush1.bf16.msra.mxu0 %v1104
    %1130 = vmatprep.subr.bf16.mxu0 0
    %1131 = vmatpush1.bf16.msra.mxu0 %v1103
    %1132 = vmatprep.subr.bf16.mxu0 0
    %1133 = vmatpush1.bf16.msra.mxu0 %v1102
    %1134 = vmatprep.subr.bf16.mxu0 0
    %1135 = vmatpush2.bf16.msra.mxu0 0
    %1136 = vmatprep.subr.bf16.mxu0 0
    %1137 = vmatpush2.bf16.msra.mxu0 0
    %1138 = vmatprep.subr.bf16.mxu0 0
    %1139 = vmatpush2.bf16.msra.mxu0 0
    %1140 = vmatprep.subr.bf16.mxu0 0
    %1141 = vmatpush2.bf16.msra.mxu0 0
    %1142 = vmatprep.subr.bf16.mxu0 0
    %1143 = vmatpush2.bf16.msra.mxu0 0
    %1144 = vmatprep.subr.bf16.mxu0 0
    %1145 = vmatpush2.bf16.msra.mxu0 0
    %1146 = vmatprep.subr.bf16.mxu0 0
    %1147 = vmatpush2.bf16.msra.mxu0 0
    %1148 = vmatprep.subr.bf16.mxu0 0
    %1149 = vmatpush2.bf16.msra.mxu0 0
    %1150 = vmatprep.mubr.bf16.mxu0 0
    %1151 = vmatmul.mubr.bf16.gmra.mxu0 %v1049
    %v1152 = vpop.f32.mrf.mxu0
    %v1153 = vadd.f32 %v1069, %v1152
    %v1154 = vpop.f32.mrf.mxu0
    %v1155 = vpop.f32.mrf.mxu0
    %v1156 = vadd.f32 %v1069, %v1155
    %v1157 = vpop.f32.mrf.mxu0
    %1158 = vdwg.mxu0
    %v1161 = vcombine.high %v1153, %v1153
    %v1163 = vunpack.c.l.s4 1983009808
    %v1164 = vunpack.c.0.s8 %v1163
    %v1165 = vlaneseq
    %v1166 = vshrl.u32 %v1165, 7
    %v1167 = vsub.s32 %v1164, %v1166
    %v1168 = vrot.slane %v1153, %v1167
    %v1170 = vunpack.c.l.s4 1983009808
    %v1171 = vunpack.c.0.s8 %v1170
    %v1172 = vlaneseq
    %v1173 = vshrl.u32 %v1172, 7
    %v1174 = vsub.s32 %v1171, %v1173
    %v1175 = vrot.slane %v1161, %v1174
    %v1176 = vcombine.high %v1168, %v1168
    %v1177 = vcombine.high %v1175, %v1175
    %v1178 = vcombine.high %v1156, %v1156
    %v1180 = vunpack.c.l.s4 1983009808
    %v1181 = vunpack.c.0.s8 %v1180
    %v1182 = vlaneseq
    %v1183 = vshrl.u32 %v1182, 7
    %v1184 = vsub.s32 %v1181, %v1183
    %v1185 = vrot.slane %v1156, %v1184
    %v1187 = vunpack.c.l.s4 1983009808
    %v1188 = vunpack.c.0.s8 %v1187
    %v1189 = vlaneseq
    %v1190 = vshrl.u32 %v1189, 7
    %v1191 = vsub.s32 %v1188, %v1190
    %v1192 = vrot.slane %v1178, %v1191
    %v1193 = vcombine.high %v1185, %v1185
    %v1194 = vcombine.high %v1192, %v1192
    %v1203 = vadd.f32 %v101, %v1168
    %v1204 = vadd.f32 %v102, %v1176
    %v1205 = vadd.f32 %v103, %v1175
    %v1206 = vadd.f32 %v104, %v1177
    %v1207 = vadd.f32 %v105, %v1185
    %v1208 = vadd.f32 %v106, %v1193
    %v1209 = vadd.f32 %v107, %v1192
    %v1210 = vadd.f32 %v108, %v1194
    %v1219 = vcombine.low %v1203, %v1204
    %v1220 = vcombine.low %v1205, %v1206
    %v1222 = vunpack.c.l.s4 1983009808
    %v1223 = vunpack.c.0.s8 %v1222
    %v1224 = vlaneseq
    %v1225 = vshrl.u32 %v1224, 7
    %v1226 = vsub.s32 %v1223, %v1225
    %v1227 = vrot.slane %v1219, %v1226
    %v1229 = vunpack.c.l.s4 1983009808
    %v1230 = vunpack.c.0.s8 %v1229
    %v1231 = vlaneseq
    %v1232 = vshrl.u32 %v1231, 7
    %v1233 = vsub.s32 %v1230, %v1232
    %v1234 = vrot.slane %v1220, %v1233
    %v1235 = vcombine.low %v1227, %v1234
    %v1236 = vcombine.low %v1207, %v1208
    %v1237 = vcombine.low %v1209, %v1210
    %v1239 = vunpack.c.l.s4 1983009808
    %v1240 = vunpack.c.0.s8 %v1239
    %v1241 = vlaneseq
    %v1242 = vshrl.u32 %v1241, 7
    %v1243 = vsub.s32 %v1240, %v1242
    %v1244 = vrot.slane %v1236, %v1243
    %v1246 = vunpack.c.l.s4 1983009808
    %v1247 = vunpack.c.0.s8 %v1246
    %v1248 = vlaneseq
    %v1249 = vshrl.u32 %v1248, 7
    %v1250 = vsub.s32 %v1247, %v1249
    %v1251 = vrot.slane %v1237, %v1250
    %v1252 = vcombine.low %v1244, %v1251
    %1255 = vadd.xlane.f32.xlu0 %v1235
    %v1256 = vpop.xlane.xlu0 %1255
    %1257 = vadd.xlane.f32.xlu0 %v1252
    %v1258 = vpop.xlane.xlu0 %1257
    %v1259 = vrcp.pop 128.0
    %v1260 = vmul.f32 %v1256, %v1259
    %v1261 = vmul.f32 %v1258, %v1259
    %v1265 = vunpack.c.l.s4 269488144
    %v1266 = vunpack.c.0.s8 %v1265
    %v1267 = vlaneseq
    %v1268 = vshrl.u32 %v1267, 7
    %v1269 = vsub.s32 %v1266, %v1268
    %v1270 = vrot.slane %v1260, %v1269
    %v1272 = vunpack.c.l.s4 842150450
    %v1273 = vunpack.c.0.s8 %v1272
    %v1274 = vlaneseq
    %v1275 = vshrl.u32 %v1274, 7
    %v1276 = vsub.s32 %v1273, %v1275
    %v1277 = vrot.slane %v1260, %v1276
    %v1279 = vunpack.c.l.s4 1414812756
    %v1280 = vunpack.c.0.s8 %v1279
    %v1281 = vlaneseq
    %v1282 = vshrl.u32 %v1281, 7
    %v1283 = vsub.s32 %v1280, %v1282
    %v1284 = vrot.slane %v1260, %v1283
    %v1286 = vunpack.c.l.s4 1987475062
    %v1287 = vunpack.c.0.s8 %v1286
    %v1288 = vlaneseq
    %v1289 = vshrl.u32 %v1288, 7
    %v1290 = vsub.s32 %v1287, %v1289
    %v1291 = vrot.slane %v1260, %v1290
    %v1293 = vunpack.c.l.s4 269488144
    %v1294 = vunpack.c.0.s8 %v1293
    %v1295 = vlaneseq
    %v1296 = vshrl.u32 %v1295, 7
    %v1297 = vsub.s32 %v1294, %v1296
    %v1298 = vrot.slane %v1261, %v1297
    %v1300 = vunpack.c.l.s4 842150450
    %v1301 = vunpack.c.0.s8 %v1300
    %v1302 = vlaneseq
    %v1303 = vshrl.u32 %v1302, 7
    %v1304 = vsub.s32 %v1301, %v1303
    %v1305 = vrot.slane %v1261, %v1304
    %v1307 = vunpack.c.l.s4 1414812756
    %v1308 = vunpack.c.0.s8 %v1307
    %v1309 = vlaneseq
    %v1310 = vshrl.u32 %v1309, 7
    %v1311 = vsub.s32 %v1308, %v1310
    %v1312 = vrot.slane %v1261, %v1311
    %v1314 = vunpack.c.l.s4 1987475062
    %v1315 = vunpack.c.0.s8 %v1314
    %v1316 = vlaneseq
    %v1317 = vshrl.u32 %v1316, 7
    %v1318 = vsub.s32 %v1315, %v1317
    %v1319 = vrot.slane %v1261, %v1318
    %v1328 = vsub.f32 %v1203, %v1270
    %v1329 = vsub.f32 %v1204, %v1277
    %v1330 = vsub.f32 %v1205, %v1284
    %v1331 = vsub.f32 %v1206, %v1291
    %v1332 = vsub.f32 %v1207, %v1298
    %v1333 = vsub.f32 %v1208, %v1305
    %v1334 = vsub.f32 %v1209, %v1312
    %v1335 = vsub.f32 %v1210, %v1319
    %v1336 = vmul.f32 %v1328, %v1328
    %v1337 = vmul.f32 %v1329, %v1329
    %v1338 = vmul.f32 %v1330, %v1330
    %v1339 = vmul.f32 %v1331, %v1331
    %v1340 = vmul.f32 %v1332, %v1332
    %v1341 = vmul.f32 %v1333, %v1333
    %v1342 = vmul.f32 %v1334, %v1334
    %v1343 = vmul.f32 %v1335, %v1335
    %v1352 = vcombine.low %v1336, %v1337
    %v1353 = vcombine.low %v1338, %v1339
    %v1355 = vunpack.c.l.s4 1983009808
    %v1356 = vunpack.c.0.s8 %v1355
    %v1357 = vlaneseq
    %v1358 = vshrl.u32 %v1357, 7
    %v1359 = vsub.s32 %v1356, %v1358
    %v1360 = vrot.slane %v1352, %v1359
    %v1362 = vunpack.c.l.s4 1983009808
    %v1363 = vunpack.c.0.s8 %v1362
    %v1364 = vlaneseq
    %v1365 = vshrl.u32 %v1364, 7
    %v1366 = vsub.s32 %v1363, %v1365
    %v1367 = vrot.slane %v1353, %v1366
    %v1368 = vcombine.low %v1360, %v1367
    %v1369 = vcombine.low %v1340, %v1341
    %v1370 = vcombine.low %v1342, %v1343
    %v1372 = vunpack.c.l.s4 1983009808
    %v1373 = vunpack.c.0.s8 %v1372
    %v1374 = vlaneseq
    %v1375 = vshrl.u32 %v1374, 7
    %v1376 = vsub.s32 %v1373, %v1375
    %v1377 = vrot.slane %v1369, %v1376
    %v1379 = vunpack.c.l.s4 1983009808
    %v1380 = vunpack.c.0.s8 %v1379
    %v1381 = vlaneseq
    %v1382 = vshrl.u32 %v1381, 7
    %v1383 = vsub.s32 %v1380, %v1382
    %v1384 = vrot.slane %v1370, %v1383
    %v1385 = vcombine.low %v1377, %v1384
    %1388 = vadd.xlane.f32.xlu0 %v1368
    %v1389 = vpop.xlane.xlu0 %1388
    %1390 = vadd.xlane.f32.xlu0 %v1385
    %v1391 = vpop.xlane.xlu0 %1390
    %v1392 = vmul.f32 %v1389, %v1259
    %v1393 = vmul.f32 %v1391, %v1259
    %v1394 = vadd.f32 %v1392, 1e-05
    %v1395 = vadd.f32 %v1393, 1e-05
    %v1396 = vrsqrt.pop %v1394
    %v1397 = vrsqrt.pop %v1395
    %v1401 = vunpack.c.l.s4 269488144
    %v1402 = vunpack.c.0.s8 %v1401
    %v1403 = vlaneseq
    %v1404 = vshrl.u32 %v1403, 7
    %v1405 = vsub.s32 %v1402, %v1404
    %v1406 = vrot.slane %v1396, %v1405
    %v1408 = vunpack.c.l.s4 842150450
    %v1409 = vunpack.c.0.s8 %v1408
    %v1410 = vlaneseq
    %v1411 = vshrl.u32 %v1410, 7
    %v1412 = vsub.s32 %v1409, %v1411
    %v1413 = vrot.slane %v1396, %v1412
    %v1415 = vunpack.c.l.s4 1414812756
    %v1416 = vunpack.c.0.s8 %v1415
    %v1417 = vlaneseq
    %v1418 = vshrl.u32 %v1417, 7
    %v1419 = vsub.s32 %v1416, %v1418
    %v1420 = vrot.slane %v1396, %v1419
    %v1422 = vunpack.c.l.s4 1987475062
    %v1423 = vunpack.c.0.s8 %v1422
    %v1424 = vlaneseq
    %v1425 = vshrl.u32 %v1424, 7
    %v1426 = vsub.s32 %v1423, %v1425
    %v1427 = vrot.slane %v1396, %v1426
    %v1429 = vunpack.c.l.s4 269488144
    %v1430 = vunpack.c.0.s8 %v1429
    %v1431 = vlaneseq
    %v1432 = vshrl.u32 %v1431, 7
    %v1433 = vsub.s32 %v1430, %v1432
    %v1434 = vrot.slane %v1397, %v1433
    %v1436 = vunpack.c.l.s4 842150450
    %v1437 = vunpack.c.0.s8 %v1436
    %v1438 = vlaneseq
    %v1439 = vshrl.u32 %v1438, 7
    %v1440 = vsub.s32 %v1437, %v1439
    %v1441 = vrot.slane %v1397, %v1440
    %v1443 = vunpack.c.l.s4 1414812756
    %v1444 = vunpack.c.0.s8 %v1443
    %v1445 = vlaneseq
    %v1446 = vshrl.u32 %v1445, 7
    %v1447 = vsub.s32 %v1444, %v1446
    %v1448 = vrot.slane %v1397, %v1447
    %v1450 = vunpack.c.l.s4 1987475062
    %v1451 = vunpack.c.0.s8 %v1450
    %v1452 = vlaneseq
    %v1453 = vshrl.u32 %v1452, 7
    %v1454 = vsub.s32 %v1451, %v1453
    %v1455 = vrot.slane %v1397, %v1454
    %v1464 = vmul.f32 %v1328, %v1406
    %v1465 = vmul.f32 %v1329, %v1413
    %v1466 = vmul.f32 %v1330, %v1420
    %v1467 = vmul.f32 %v1331, %v1427
    %v1468 = vmul.f32 %v1332, %v1434
    %v1469 = vmul.f32 %v1333, %v1441
    %v1470 = vmul.f32 %v1334, %v1448
    %v1471 = vmul.f32 %v1335, %v1455
    %v1472 = vlaneseq
    %v1473 = vshrl.u32 %v1472, 7
    %v1474 = vsub.s32 4, %v1473
    %v1475 = vrot.slane %v99, %v1474
    %v1477 = vcombine.high %v1475, %v1475
    %v1479 = vunpack.c.l.s4 1983009808
    %v1480 = vunpack.c.0.s8 %v1479
    %v1481 = vlaneseq
    %v1482 = vshrl.u32 %v1481, 7
    %v1483 = vsub.s32 %v1480, %v1482
    %v1484 = vrot.slane %v1475, %v1483
    %v1486 = vunpack.c.l.s4 1983009808
    %v1487 = vunpack.c.0.s8 %v1486
    %v1488 = vlaneseq
    %v1489 = vshrl.u32 %v1488, 7
    %v1490 = vsub.s32 %v1487, %v1489
    %v1491 = vrot.slane %v1477, %v1490
    %v1492 = vcombine.high %v1484, %v1484
    %v1493 = vcombine.high %v1491, %v1491
    %v1498 = vmul.f32 %v1464, %v1484
    %v1499 = vmul.f32 %v1465, %v1492
    %v1500 = vmul.f32 %v1466, %v1491
    %v1501 = vmul.f32 %v1467, %v1493
    %v1502 = vmul.f32 %v1468, %v1484
    %v1503 = vmul.f32 %v1469, %v1492
    %v1504 = vmul.f32 %v1470, %v1491
    %v1505 = vmul.f32 %v1471, %v1493
    %v1506 = vlaneseq
    %v1507 = vshrl.u32 %v1506, 7
    %v1508 = vsub.s32 4, %v1507
    %v1509 = vrot.slane %v100, %v1508
    %v1511 = vcombine.high %v1509, %v1509
    %v1513 = vunpack.c.l.s4 1983009808
    %v1514 = vunpack.c.0.s8 %v1513
    %v1515 = vlaneseq
    %v1516 = vshrl.u32 %v1515, 7
    %v1517 = vsub.s32 %v1514, %v1516
    %v1518 = vrot.slane %v1509, %v1517
    %v1520 = vunpack.c.l.s4 1983009808
    %v1521 = vunpack.c.0.s8 %v1520
    %v1522 = vlaneseq
    %v1523 = vshrl.u32 %v1522, 7
    %v1524 = vsub.s32 %v1521, %v1523
    %v1525 = vrot.slane %v1511, %v1524
    %v1526 = vcombine.high %v1518, %v1518
    %v1527 = vcombine.high %v1525, %v1525
    %v1532 = vadd.f32 %v1498, %v1518
    %v1533 = vadd.f32 %v1499, %v1526
    %v1534 = vadd.f32 %v1500, %v1525
    %v1535 = vadd.f32 %v1501, %v1527
    %v1536 = vadd.f32 %v1502, %v1518
    %v1537 = vadd.f32 %v1503, %v1526
    %v1538 = vadd.f32 %v1504, %v1525
    %v1539 = vadd.f32 %v1505, %v1527
    %v1548 = vcombine.low %v1532, %v1533
    %v1549 = vcombine.low %v1534, %v1535
    %v1551 = vunpack.c.l.s4 1983009808
    %v1552 = vunpack.c.0.s8 %v1551
    %v1553 = vlaneseq
    %v1554 = vshrl.u32 %v1553, 7
    %v1555 = vsub.s32 %v1552, %v1554
    %v1556 = vrot.slane %v1548, %v1555
    %v1558 = vunpack.c.l.s4 1983009808
    %v1559 = vunpack.c.0.s8 %v1558
    %v1560 = vlaneseq
    %v1561 = vshrl.u32 %v1560, 7
    %v1562 = vsub.s32 %v1559, %v1561
    %v1563 = vrot.slane %v1549, %v1562
    %v1564 = vcombine.low %v1556, %v1563
    %v1565 = vcombine.low %v1536, %v1537
    %v1566 = vcombine.low %v1538, %v1539
    %v1568 = vunpack.c.l.s4 1983009808
    %v1569 = vunpack.c.0.s8 %v1568
    %v1570 = vlaneseq
    %v1571 = vshrl.u32 %v1570, 7
    %v1572 = vsub.s32 %v1569, %v1571
    %v1573 = vrot.slane %v1565, %v1572
    %v1575 = vunpack.c.l.s4 1983009808
    %v1576 = vunpack.c.0.s8 %v1575
    %v1577 = vlaneseq
    %v1578 = vshrl.u32 %v1577, 7
    %v1579 = vsub.s32 %v1576, %v1578
    %v1580 = vrot.slane %v1566, %v1579
    %v1581 = vcombine.low %v1573, %v1580
    %v1584 = vpack.c.bf16 %v1581, %v1564
    %v1585 = vld [vmem:[#allocation8] sm:$0xff]
    %v1586 = vld [vmem:[#allocation8 + $0x8] sm:$0xff]
    %v1587 = vld [vmem:[#allocation8 + $0x10] sm:$0xff]
    %v1588 = vld [vmem:[#allocation8 + $0x18] sm:$0xff]
    %v1589 = vld [vmem:[#allocation8 + $0x20] sm:$0xff]
    %v1590 = vld [vmem:[#allocation8 + $0x28] sm:$0xff]
    %v1591 = vld [vmem:[#allocation8 + $0x30] sm:$0xff]
    %v1592 = vld [vmem:[#allocation8 + $0x38] sm:$0xff]
    %v1593 = vld [vmem:[#allocation8 + $0x40] sm:$0xff]
    %v1594 = vld [vmem:[#allocation8 + $0x48] sm:$0xff]
    %v1595 = vld [vmem:[#allocation8 + $0x50] sm:$0xff]
    %v1596 = vld [vmem:[#allocation8 + $0x58] sm:$0xff]
    %v1597 = vld [vmem:[#allocation8 + $0x60] sm:$0xff]
    %v1598 = vld [vmem:[#allocation8 + $0x68] sm:$0xff]
    %v1599 = vld [vmem:[#allocation8 + $0x70] sm:$0xff]
    %v1600 = vld [vmem:[#allocation8 + $0x78] sm:$0xff]
    %v1601 = vlaneseq
    %v1602 = vshrl.u32 %v1601, 7
    %v1603 = vsub.s32 1, %v1602
    %v1604 = vrot.slane %v99, %v1603
    %v1605 = vlaneseq
    %v1606 = vshrl.u32 %v1605, 7
    %v1607 = vsub.s32 1, %v1606
    %v1608 = vrot.slane %v100, %v1607
    %v1625 = vunpack.c.l.b16 %v1585
    %v1626 = vunpack.c.h.b16 %v1585
    %v1627 = vunpack.c.l.b16 %v1586
    %v1628 = vunpack.c.h.b16 %v1586
    %v1629 = vunpack.c.l.b16 %v1587
    %v1630 = vunpack.c.h.b16 %v1587
    %v1631 = vunpack.c.l.b16 %v1588
    %v1632 = vunpack.c.h.b16 %v1588
    %v1633 = vunpack.c.l.b16 %v1589
    %v1634 = vunpack.c.h.b16 %v1589
    %v1635 = vunpack.c.l.b16 %v1590
    %v1636 = vunpack.c.h.b16 %v1590
    %v1637 = vunpack.c.l.b16 %v1591
    %v1638 = vunpack.c.h.b16 %v1591
    %v1639 = vunpack.c.l.b16 %v1592
    %v1640 = vunpack.c.h.b16 %v1592
    %v1641 = vunpack.c.l.b16 %v1593
    %v1642 = vunpack.c.h.b16 %v1593
    %v1643 = vunpack.c.l.b16 %v1594
    %v1644 = vunpack.c.h.b16 %v1594
    %v1645 = vunpack.c.l.b16 %v1595
    %v1646 = vunpack.c.h.b16 %v1595
    %v1647 = vunpack.c.l.b16 %v1596
    %v1648 = vunpack.c.h.b16 %v1596
    %v1649 = vunpack.c.l.b16 %v1597
    %v1650 = vunpack.c.h.b16 %v1597
    %v1651 = vunpack.c.l.b16 %v1598
    %v1652 = vunpack.c.h.b16 %v1598
    %v1653 = vunpack.c.l.b16 %v1599
    %v1654 = vunpack.c.h.b16 %v1599
    %v1655 = vunpack.c.l.b16 %v1600
    %v1656 = vunpack.c.h.b16 %v1600
    %v1657 = vpack.c.b16 %v1627, %v1625
    %v1658 = vpack.c.b16 %v1628, %v1626
    %v1659 = vpack.c.b16 %v1631, %v1629
    %v1660 = vpack.c.b16 %v1632, %v1630
    %v1661 = vpack.c.b16 %v1635, %v1633
    %v1662 = vpack.c.b16 %v1636, %v1634
    %v1663 = vpack.c.b16 %v1639, %v1637
    %v1664 = vpack.c.b16 %v1640, %v1638
    %v1665 = vpack.c.b16 %v1643, %v1641
    %v1666 = vpack.c.b16 %v1644, %v1642
    %v1667 = vpack.c.b16 %v1647, %v1645
    %v1668 = vpack.c.b16 %v1648, %v1646
    %v1669 = vpack.c.b16 %v1651, %v1649
    %v1670 = vpack.c.b16 %v1652, %v1650
    %v1671 = vpack.c.b16 %v1655, %v1653
    %v1672 = vpack.c.b16 %v1656, %v1654
    %1689 = vmatprep.subr.bf16.mxu0 %v1672
    %1690 = vmatpush1.bf16.msra.mxu0 %v1671
    %1691 = vmatprep.subr.bf16.mxu0 %v1670
    %1692 = vmatpush1.bf16.msra.mxu0 %v1669
    %1693 = vmatprep.subr.bf16.mxu0 %v1668
    %1694 = vmatpush1.bf16.msra.mxu0 %v1667
    %1695 = vmatprep.subr.bf16.mxu0 %v1666
    %1696 = vmatpush1.bf16.msra.mxu0 %v1665
    %1697 = vmatprep.subr.bf16.mxu0 %v1664
    %1698 = vmatpush1.bf16.msra.mxu0 %v1663
    %1699 = vmatprep.subr.bf16.mxu0 %v1662
    %1700 = vmatpush1.bf16.msra.mxu0 %v1661
    %1701 = vmatprep.subr.bf16.mxu0 %v1660
    %1702 = vmatpush1.bf16.msra.mxu0 %v1659
    %1703 = vmatprep.subr.bf16.mxu0 %v1658
    %1704 = vmatpush1.bf16.msra.mxu0 %v1657
    %1705 = vmatprep.subr.bf16.mxu0 0
    %1706 = vmatpush2.bf16.msra.mxu0 0
    %1707 = vmatprep.subr.bf16.mxu0 0
    %1708 = vmatpush2.bf16.msra.mxu0 0
    %1709 = vmatprep.subr.bf16.mxu0 0
    %1710 = vmatpush2.bf16.msra.mxu0 0
    %1711 = vmatprep.subr.bf16.mxu0 0
    %1712 = vmatpush2.bf16.msra.mxu0 0
    %1713 = vmatprep.subr.bf16.mxu0 0
    %1714 = vmatpush2.bf16.msra.mxu0 0
    %1715 = vmatprep.subr.bf16.mxu0 0
    %1716 = vmatpush2.bf16.msra.mxu0 0
    %1717 = vmatprep.subr.bf16.mxu0 0
    %1718 = vmatpush2.bf16.msra.mxu0 0
    %1719 = vmatprep.subr.bf16.mxu0 0
    %1720 = vmatpush2.bf16.msra.mxu0 0
    %1721 = vmatprep.mubr.bf16.mxu0 0
    %1722 = vmatmul.mubr.bf16.gmra.mxu0 %v1584
    %v1723 = vpop.f32.mrf.mxu0
    %v1724 = vadd.f32 %v1604, %v1723
    %v1725 = vpop.f32.mrf.mxu0
    %v1726 = vadd.f32 %v1608, %v1725
    %v1727 = vpop.f32.mrf.mxu0
    %v1728 = vadd.f32 %v1604, %v1727
    %v1729 = vpop.f32.mrf.mxu0
    %v1730 = vadd.f32 %v1608, %v1729
    %1731 = vdwg.mxu0
    %v1732 = vmax.f32 %v1724, 0.0
    %v1733 = vmax.f32 %v1726, 0.0
    %v1734 = vmax.f32 %v1728, 0.0
    %v1735 = vmax.f32 %v1730, 0.0
    %v1736 = vpack.c.bf16 %v1734, %v1732
    %v1737 = vpack.c.bf16 %v1735, %v1733
    %v1738 = vld [vmem:[#allocation10] sm:$0xf]
    %v1739 = vld [vmem:[#allocation10 + $0x4] sm:$0xf]
    %v1740 = vld [vmem:[#allocation10 + $0x8] sm:$0xf]
    %v1741 = vld [vmem:[#allocation10 + $0xc] sm:$0xf]
    %v1742 = vld [vmem:[#allocation10 + $0x10] sm:$0xf]
    %v1743 = vld [vmem:[#allocation10 + $0x14] sm:$0xf]
    %v1744 = vld [vmem:[#allocation10 + $0x18] sm:$0xf]
    %v1745 = vld [vmem:[#allocation10 + $0x1c] sm:$0xf]
    %v1746 = vld [vmem:[#allocation10 + $0x20] sm:$0xf]
    %v1747 = vld [vmem:[#allocation10 + $0x24] sm:$0xf]
    %v1748 = vld [vmem:[#allocation10 + $0x28] sm:$0xf]
    %v1749 = vld [vmem:[#allocation10 + $0x2c] sm:$0xf]
    %v1750 = vld [vmem:[#allocation10 + $0x30] sm:$0xf]
    %v1751 = vld [vmem:[#allocation10 + $0x34] sm:$0xf]
    %v1752 = vld [vmem:[#allocation10 + $0x38] sm:$0xf]
    %v1753 = vld [vmem:[#allocation10 + $0x3c] sm:$0xf]
    %v1754 = vld [vmem:[#allocation10 + $0x40] sm:$0xf]
    %v1755 = vld [vmem:[#allocation10 + $0x44] sm:$0xf]
    %v1756 = vld [vmem:[#allocation10 + $0x48] sm:$0xf]
    %v1757 = vld [vmem:[#allocation10 + $0x4c] sm:$0xf]
    %v1758 = vld [vmem:[#allocation10 + $0x50] sm:$0xf]
    %v1759 = vld [vmem:[#allocation10 + $0x54] sm:$0xf]
    %v1760 = vld [vmem:[#allocation10 + $0x58] sm:$0xf]
    %v1761 = vld [vmem:[#allocation10 + $0x5c] sm:$0xf]
    %v1762 = vld [vmem:[#allocation10 + $0x60] sm:$0xf]
    %v1763 = vld [vmem:[#allocation10 + $0x64] sm:$0xf]
    %v1764 = vld [vmem:[#allocation10 + $0x68] sm:$0xf]
    %v1765 = vld [vmem:[#allocation10 + $0x6c] sm:$0xf]
    %v1766 = vld [vmem:[#allocation10 + $0x70] sm:$0xf]
    %v1767 = vld [vmem:[#allocation10 + $0x74] sm:$0xf]
    %v1768 = vld [vmem:[#allocation10 + $0x78] sm:$0xf]
    %v1769 = vld [vmem:[#allocation10 + $0x7c] sm:$0xf]
    %v1770 = vlaneseq
    %v1771 = vshrl.u32 %v1770, 7
    %v1772 = vsub.s32 3, %v1771
    %v1773 = vrot.slane %v99, %v1772
    %v1806 = vunpack.c.l.b16 %v1738
    %v1807 = vunpack.c.l.b16 %v1739
    %v1808 = vunpack.c.l.b16 %v1740
    %v1809 = vunpack.c.l.b16 %v1741
    %v1810 = vunpack.c.l.b16 %v1742
    %v1811 = vunpack.c.l.b16 %v1743
    %v1812 = vunpack.c.l.b16 %v1744
    %v1813 = vunpack.c.l.b16 %v1745
    %v1814 = vunpack.c.l.b16 %v1746
    %v1815 = vunpack.c.l.b16 %v1747
    %v1816 = vunpack.c.l.b16 %v1748
    %v1817 = vunpack.c.l.b16 %v1749
    %v1818 = vunpack.c.l.b16 %v1750
    %v1819 = vunpack.c.l.b16 %v1751
    %v1820 = vunpack.c.l.b16 %v1752
    %v1821 = vunpack.c.l.b16 %v1753
    %v1822 = vunpack.c.l.b16 %v1754
    %v1823 = vunpack.c.l.b16 %v1755
    %v1824 = vunpack.c.l.b16 %v1756
    %v1825 = vunpack.c.l.b16 %v1757
    %v1826 = vunpack.c.l.b16 %v1758
    %v1827 = vunpack.c.l.b16 %v1759
    %v1828 = vunpack.c.l.b16 %v1760
    %v1829 = vunpack.c.l.b16 %v1761
    %v1830 = vunpack.c.l.b16 %v1762
    %v1831 = vunpack.c.l.b16 %v1763
    %v1832 = vunpack.c.l.b16 %v1764
    %v1833 = vunpack.c.l.b16 %v1765
    %v1834 = vunpack.c.l.b16 %v1766
    %v1835 = vunpack.c.l.b16 %v1767
    %v1836 = vunpack.c.l.b16 %v1768
    %v1837 = vunpack.c.l.b16 %v1769
    %v1838 = vpack.c.b16 %v1807, %v1806
    %v1839 = vpack.c.b16 %v1809, %v1808
    %v1840 = vpack.c.b16 %v1811, %v1810
    %v1841 = vpack.c.b16 %v1813, %v1812
    %v1842 = vpack.c.b16 %v1815, %v1814
    %v1843 = vpack.c.b16 %v1817, %v1816
    %v1844 = vpack.c.b16 %v1819, %v1818
    %v1845 = vpack.c.b16 %v1821, %v1820
    %v1846 = vpack.c.b16 %v1823, %v1822
    %v1847 = vpack.c.b16 %v1825, %v1824
    %v1848 = vpack.c.b16 %v1827, %v1826
    %v1849 = vpack.c.b16 %v1829, %v1828
    %v1850 = vpack.c.b16 %v1831, %v1830
    %v1851 = vpack.c.b16 %v1833, %v1832
    %v1852 = vpack.c.b16 %v1835, %v1834
    %v1853 = vpack.c.b16 %v1837, %v1836
    %1870 = vmatprep.subr.bf16.mxu0 0
    %1871 = vmatpush1.bf16.msra.mxu0 %v1845
    %1872 = vmatprep.subr.bf16.mxu0 0
    %1873 = vmatpush1.bf16.msra.mxu0 %v1844
    %1874 = vmatprep.subr.bf16.mxu0 0
    %1875 = vmatpush1.bf16.msra.mxu0 %v1843
    %1876 = vmatprep.subr.bf16.mxu0 0
    %1877 = vmatpush1.bf16.msra.mxu0 %v1842
    %1878 = vmatprep.subr.bf16.mxu0 0
    %1879 = vmatpush1.bf16.msra.mxu0 %v1841
    %1880 = vmatprep.subr.bf16.mxu0 0
    %1881 = vmatpush1.bf16.msra.mxu0 %v1840
    %1882 = vmatprep.subr.bf16.mxu0 0
    %1883 = vmatpush1.bf16.msra.mxu0 %v1839
    %1884 = vmatprep.subr.bf16.mxu0 0
    %1885 = vmatpush1.bf16.msra.mxu0 %v1838
    %1886 = vmatprep.subr.bf16.mxu0 0
    %1887 = vmatpush2.bf16.msra.mxu0 %v1853
    %1888 = vmatprep.subr.bf16.mxu0 0
    %1889 = vmatpush2.bf16.msra.mxu0 %v1852
    %1890 = vmatprep.subr.bf16.mxu0 0
    %1891 = vmatpush2.bf16.msra.mxu0 %v1851
    %1892 = vmatprep.subr.bf16.mxu0 0
    %1893 = vmatpush2.bf16.msra.mxu0 %v1850
    %1894 = vmatprep.subr.bf16.mxu0 0
    %1895 = vmatpush2.bf16.msra.mxu0 %v1849
    %1896 = vmatprep.subr.bf16.mxu0 0
    %1897 = vmatpush2.bf16.msra.mxu0 %v1848
    %1898 = vmatprep.subr.bf16.mxu0 0
    %1899 = vmatpush2.bf16.msra.mxu0 %v1847
    %1900 = vmatprep.subr.bf16.mxu0 0
    %1901 = vmatpush2.bf16.msra.mxu0 %v1846
    %1902 = vmatprep.mubr.bf16.mxu0 %v1737
    %1903 = vmatmul.mubr.bf16.gmra.mxu0 %v1736
    %v1904 = vpop.f32.mrf.mxu0
    %v1905 = vadd.f32 %v1773, %v1904
    %v1906 = vpop.f32.mrf.mxu0
    %v1907 = vpop.f32.mrf.mxu0
    %v1908 = vadd.f32 %v1773, %v1907
    %v1909 = vpop.f32.mrf.mxu0
    %1910 = vdwg.mxu0
    %v1913 = vcombine.high %v1905, %v1905
    %v1915 = vunpack.c.l.s4 1983009808
    %v1916 = vunpack.c.0.s8 %v1915
    %v1917 = vlaneseq
    %v1918 = vshrl.u32 %v1917, 7
    %v1919 = vsub.s32 %v1916, %v1918
    %v1920 = vrot.slane %v1905, %v1919
    %v1922 = vunpack.c.l.s4 1983009808
    %v1923 = vunpack.c.0.s8 %v1922
    %v1924 = vlaneseq
    %v1925 = vshrl.u32 %v1924, 7
    %v1926 = vsub.s32 %v1923, %v1925
    %v1927 = vrot.slane %v1913, %v1926
    %v1928 = vcombine.high %v1920, %v1920
    %v1929 = vcombine.high %v1927, %v1927
    %v1930 = vcombine.high %v1908, %v1908
    %v1932 = vunpack.c.l.s4 1983009808
    %v1933 = vunpack.c.0.s8 %v1932
    %v1934 = vlaneseq
    %v1935 = vshrl.u32 %v1934, 7
    %v1936 = vsub.s32 %v1933, %v1935
    %v1937 = vrot.slane %v1908, %v1936
    %v1939 = vunpack.c.l.s4 1983009808
    %v1940 = vunpack.c.0.s8 %v1939
    %v1941 = vlaneseq
    %v1942 = vshrl.u32 %v1941, 7
    %v1943 = vsub.s32 %v1940, %v1942
    %v1944 = vrot.slane %v1930, %v1943
    %v1945 = vcombine.high %v1937, %v1937
    %v1946 = vcombine.high %v1944, %v1944
    %v1955 = vadd.f32 %v1532, %v1920
    %v1956 = vadd.f32 %v1533, %v1928
    %v1957 = vadd.f32 %v1534, %v1927
    %v1958 = vadd.f32 %v1535, %v1929
    %v1959 = vadd.f32 %v1536, %v1937
    %v1960 = vadd.f32 %v1537, %v1945
    %v1961 = vadd.f32 %v1538, %v1944
    %v1962 = vadd.f32 %v1539, %v1946
    %v1971 = vcombine.low %v1955, %v1956
    %v1972 = vcombine.low %v1957, %v1958
    %v1974 = vunpack.c.l.s4 1983009808
    %v1975 = vunpack.c.0.s8 %v1974
    %v1976 = vlaneseq
    %v1977 = vshrl.u32 %v1976, 7
    %v1978 = vsub.s32 %v1975, %v1977
    %v1979 = vrot.slane %v1971, %v1978
    %v1981 = vunpack.c.l.s4 1983009808
    %v1982 = vunpack.c.0.s8 %v1981
    %v1983 = vlaneseq
    %v1984 = vshrl.u32 %v1983, 7
    %v1985 = vsub.s32 %v1982, %v1984
    %v1986 = vrot.slane %v1972, %v1985
    %v1987 = vcombine.low %v1979, %v1986
    %v1988 = vcombine.low %v1959, %v1960
    %v1989 = vcombine.low %v1961, %v1962
    %v1991 = vunpack.c.l.s4 1983009808
    %v1992 = vunpack.c.0.s8 %v1991
    %v1993 = vlaneseq
    %v1994 = vshrl.u32 %v1993, 7
    %v1995 = vsub.s32 %v1992, %v1994
    %v1996 = vrot.slane %v1988, %v1995
    %v1998 = vunpack.c.l.s4 1983009808
    %v1999 = vunpack.c.0.s8 %v1998
    %v2000 = vlaneseq
    %v2001 = vshrl.u32 %v2000, 7
    %v2002 = vsub.s32 %v1999, %v2001
    %v2003 = vrot.slane %v1989, %v2002
    %v2004 = vcombine.low %v1996, %v2003
    %2007 = vadd.xlane.f32.xlu0 %v1987
    %v2008 = vpop.xlane.xlu0 %2007
    %2009 = vadd.xlane.f32.xlu0 %v2004
    %v2010 = vpop.xlane.xlu0 %2009
    %v2011 = vmul.f32 %v2008, %v1259
    %v2012 = vmul.f32 %v2010, %v1259
    %v2016 = vunpack.c.l.s4 269488144
    %v2017 = vunpack.c.0.s8 %v2016
    %v2018 = vlaneseq
    %v2019 = vshrl.u32 %v2018, 7
    %v2020 = vsub.s32 %v2017, %v2019
    %v2021 = vrot.slane %v2011, %v2020
    %v2023 = vunpack.c.l.s4 842150450
    %v2024 = vunpack.c.0.s8 %v2023
    %v2025 = vlaneseq
    %v2026 = vshrl.u32 %v2025, 7
    %v2027 = vsub.s32 %v2024, %v2026
    %v2028 = vrot.slane %v2011, %v2027
    %v2030 = vunpack.c.l.s4 1414812756
    %v2031 = vunpack.c.0.s8 %v2030
    %v2032 = vlaneseq
    %v2033 = vshrl.u32 %v2032, 7
    %v2034 = vsub.s32 %v2031, %v2033
    %v2035 = vrot.slane %v2011, %v2034
    %v2037 = vunpack.c.l.s4 1987475062
    %v2038 = vunpack.c.0.s8 %v2037
    %v2039 = vlaneseq
    %v2040 = vshrl.u32 %v2039, 7
    %v2041 = vsub.s32 %v2038, %v2040
    %v2042 = vrot.slane %v2011, %v2041
    %v2044 = vunpack.c.l.s4 269488144
    %v2045 = vunpack.c.0.s8 %v2044
    %v2046 = vlaneseq
    %v2047 = vshrl.u32 %v2046, 7
    %v2048 = vsub.s32 %v2045, %v2047
    %v2049 = vrot.slane %v2012, %v2048
    %v2051 = vunpack.c.l.s4 842150450
    %v2052 = vunpack.c.0.s8 %v2051
    %v2053 = vlaneseq
    %v2054 = vshrl.u32 %v2053, 7
    %v2055 = vsub.s32 %v2052, %v2054
    %v2056 = vrot.slane %v2012, %v2055
    %v2058 = vunpack.c.l.s4 1414812756
    %v2059 = vunpack.c.0.s8 %v2058
    %v2060 = vlaneseq
    %v2061 = vshrl.u32 %v2060, 7
    %v2062 = vsub.s32 %v2059, %v2061
    %v2063 = vrot.slane %v2012, %v2062
    %v2065 = vunpack.c.l.s4 1987475062
    %v2066 = vunpack.c.0.s8 %v2065
    %v2067 = vlaneseq
    %v2068 = vshrl.u32 %v2067, 7
    %v2069 = vsub.s32 %v2066, %v2068
    %v2070 = vrot.slane %v2012, %v2069
    %v2079 = vsub.f32 %v1955, %v2021
    %v2080 = vsub.f32 %v1956, %v2028
    %v2081 = vsub.f32 %v1957, %v2035
    %v2082 = vsub.f32 %v1958, %v2042
    %v2083 = vsub.f32 %v1959, %v2049
    %v2084 = vsub.f32 %v1960, %v2056
    %v2085 = vsub.f32 %v1961, %v2063
    %v2086 = vsub.f32 %v1962, %v2070
    %v2087 = vmul.f32 %v2079, %v2079
    %v2088 = vmul.f32 %v2080, %v2080
    %v2089 = vmul.f32 %v2081, %v2081
    %v2090 = vmul.f32 %v2082, %v2082
    %v2091 = vmul.f32 %v2083, %v2083
    %v2092 = vmul.f32 %v2084, %v2084
    %v2093 = vmul.f32 %v2085, %v2085
    %v2094 = vmul.f32 %v2086, %v2086
    %v2103 = vcombine.low %v2087, %v2088
    %v2104 = vcombine.low %v2089, %v2090
    %v2106 = vunpack.c.l.s4 1983009808
    %v2107 = vunpack.c.0.s8 %v2106
    %v2108 = vlaneseq
    %v2109 = vshrl.u32 %v2108, 7
    %v2110 = vsub.s32 %v2107, %v2109
    %v2111 = vrot.slane %v2103, %v2110
    %v2113 = vunpack.c.l.s4 1983009808
    %v2114 = vunpack.c.0.s8 %v2113
    %v2115 = vlaneseq
    %v2116 = vshrl.u32 %v2115, 7
    %v2117 = vsub.s32 %v2114, %v2116
    %v2118 = vrot.slane %v2104, %v2117
    %v2119 = vcombine.low %v2111, %v2118
    %v2120 = vcombine.low %v2091, %v2092
    %v2121 = vcombine.low %v2093, %v2094
    %v2123 = vunpack.c.l.s4 1983009808
    %v2124 = vunpack.c.0.s8 %v2123
    %v2125 = vlaneseq
    %v2126 = vshrl.u32 %v2125, 7
    %v2127 = vsub.s32 %v2124, %v2126
    %v2128 = vrot.slane %v2120, %v2127
    %v2130 = vunpack.c.l.s4 1983009808
    %v2131 = vunpack.c.0.s8 %v2130
    %v2132 = vlaneseq
    %v2133 = vshrl.u32 %v2132, 7
    %v2134 = vsub.s32 %v2131, %v2133
    %v2135 = vrot.slane %v2121, %v2134
    %v2136 = vcombine.low %v2128, %v2135
    %2139 = vadd.xlane.f32.xlu0 %v2119
    %v2140 = vpop.xlane.xlu0 %2139
    %2141 = vadd.xlane.f32.xlu0 %v2136
    %v2142 = vpop.xlane.xlu0 %2141
    %v2143 = vmul.f32 %v2140, %v1259
    %v2144 = vmul.f32 %v2142, %v1259
    %v2145 = vadd.f32 %v2143, 1e-05
    %v2146 = vadd.f32 %v2144, 1e-05
    %v2147 = vrsqrt.pop %v2145
    %v2148 = vrsqrt.pop %v2146
    %v2152 = vunpack.c.l.s4 269488144
    %v2153 = vunpack.c.0.s8 %v2152
    %v2154 = vlaneseq
    %v2155 = vshrl.u32 %v2154, 7
    %v2156 = vsub.s32 %v2153, %v2155
    %v2157 = vrot.slane %v2147, %v2156
    %v2159 = vunpack.c.l.s4 842150450
    %v2160 = vunpack.c.0.s8 %v2159
    %v2161 = vlaneseq
    %v2162 = vshrl.u32 %v2161, 7
    %v2163 = vsub.s32 %v2160, %v2162
    %v2164 = vrot.slane %v2147, %v2163
    %v2166 = vunpack.c.l.s4 1414812756
    %v2167 = vunpack.c.0.s8 %v2166
    %v2168 = vlaneseq
    %v2169 = vshrl.u32 %v2168, 7
    %v2170 = vsub.s32 %v2167, %v2169
    %v2171 = vrot.slane %v2147, %v2170
    %v2173 = vunpack.c.l.s4 1987475062
    %v2174 = vunpack.c.0.s8 %v2173
    %v2175 = vlaneseq
    %v2176 = vshrl.u32 %v2175, 7
    %v2177 = vsub.s32 %v2174, %v2176
    %v2178 = vrot.slane %v2147, %v2177
    %v2180 = vunpack.c.l.s4 269488144
    %v2181 = vunpack.c.0.s8 %v2180
    %v2182 = vlaneseq
    %v2183 = vshrl.u32 %v2182, 7
    %v2184 = vsub.s32 %v2181, %v2183
    %v2185 = vrot.slane %v2148, %v2184
    %v2187 = vunpack.c.l.s4 842150450
    %v2188 = vunpack.c.0.s8 %v2187
    %v2189 = vlaneseq
    %v2190 = vshrl.u32 %v2189, 7
    %v2191 = vsub.s32 %v2188, %v2190
    %v2192 = vrot.slane %v2148, %v2191
    %v2194 = vunpack.c.l.s4 1414812756
    %v2195 = vunpack.c.0.s8 %v2194
    %v2196 = vlaneseq
    %v2197 = vshrl.u32 %v2196, 7
    %v2198 = vsub.s32 %v2195, %v2197
    %v2199 = vrot.slane %v2148, %v2198
    %v2201 = vunpack.c.l.s4 1987475062
    %v2202 = vunpack.c.0.s8 %v2201
    %v2203 = vlaneseq
    %v2204 = vshrl.u32 %v2203, 7
    %v2205 = vsub.s32 %v2202, %v2204
    %v2206 = vrot.slane %v2148, %v2205
    %v2215 = vmul.f32 %v2079, %v2157
    %v2216 = vmul.f32 %v2080, %v2164
    %v2217 = vmul.f32 %v2081, %v2171
    %v2218 = vmul.f32 %v2082, %v2178
    %v2219 = vmul.f32 %v2083, %v2185
    %v2220 = vmul.f32 %v2084, %v2192
    %v2221 = vmul.f32 %v2085, %v2199
    %v2222 = vmul.f32 %v2086, %v2206
    %v2223 = vlaneseq
    %v2224 = vshrl.u32 %v2223, 7
    %v2225 = vsub.s32 5, %v2224
    %v2226 = vrot.slane %v99, %v2225
    %v2228 = vcombine.high %v2226, %v2226
    %v2230 = vunpack.c.l.s4 1983009808
    %v2231 = vunpack.c.0.s8 %v2230
    %v2232 = vlaneseq
    %v2233 = vshrl.u32 %v2232, 7
    %v2234 = vsub.s32 %v2231, %v2233
    %v2235 = vrot.slane %v2226, %v2234
    %v2237 = vunpack.c.l.s4 1983009808
    %v2238 = vunpack.c.0.s8 %v2237
    %v2239 = vlaneseq
    %v2240 = vshrl.u32 %v2239, 7
    %v2241 = vsub.s32 %v2238, %v2240
    %v2242 = vrot.slane %v2228, %v2241
    %v2243 = vcombine.high %v2235, %v2235
    %v2244 = vcombine.high %v2242, %v2242
    %v2249 = vmul.f32 %v2215, %v2235
    %v2250 = vmul.f32 %v2216, %v2243
    %v2251 = vmul.f32 %v2217, %v2242
    %v2252 = vmul.f32 %v2218, %v2244
    %v2253 = vmul.f32 %v2219, %v2235
    %v2254 = vmul.f32 %v2220, %v2243
    %v2255 = vmul.f32 %v2221, %v2242
    %v2256 = vmul.f32 %v2222, %v2244
    %v2257 = vlaneseq
    %v2258 = vshrl.u32 %v2257, 7
    %v2259 = vsub.s32 5, %v2258
    %v2260 = vrot.slane %v100, %v2259
    %v2262 = vcombine.high %v2260, %v2260
    %v2264 = vunpack.c.l.s4 1983009808
    %v2265 = vunpack.c.0.s8 %v2264
    %v2266 = vlaneseq
    %v2267 = vshrl.u32 %v2266, 7
    %v2268 = vsub.s32 %v2265, %v2267
    %v2269 = vrot.slane %v2260, %v2268
    %v2271 = vunpack.c.l.s4 1983009808
    %v2272 = vunpack.c.0.s8 %v2271
    %v2273 = vlaneseq
    %v2274 = vshrl.u32 %v2273, 7
    %v2275 = vsub.s32 %v2272, %v2274
    %v2276 = vrot.slane %v2262, %v2275
    %v2277 = vcombine.high %v2269, %v2269
    %v2278 = vcombine.high %v2276, %v2276
    %v2283 = vadd.f32 %v2249, %v2269
    %v2284 = vadd.f32 %v2250, %v2277
    %v2285 = vadd.f32 %v2251, %v2276
    %v2286 = vadd.f32 %v2252, %v2278
    %v2287 = vadd.f32 %v2253, %v2269
    %v2288 = vadd.f32 %v2254, %v2277
    %v2289 = vadd.f32 %v2255, %v2276
    %v2290 = vadd.f32 %v2256, %v2278
    %2291 = vst [vmem:[#allocation11] sm:$0x3] %v2283
    %2292 = vst [vmem:[#allocation11 + $0x2] sm:$0x3] %v2284
    %2293 = vst [vmem:[#allocation11 + $0x4] sm:$0x3] %v2285
    %2294 = vst [vmem:[#allocation11 + $0x6] sm:$0x3] %v2286
    %2295 = vst [vmem:[#allocation11 + $0x8] sm:$0x3] %v2287
    %2296 = vst [vmem:[#allocation11 + $0xa] sm:$0x3] %v2288
    %2297 = vst [vmem:[#allocation11 + $0xc] sm:$0x3] %v2289
    %2298 = vst [vmem:[#allocation11 + $0xe] sm:$0x3] %v2290
    // Predicated region
    $region54: #{transformer_encoder_layer.1} parent=1 // pred_check
      _
    $region55: #{transformer_encoder_layer.1} parent=1 // pred_check_branch
      %2300 = sbr.rel (0) target = $region57
    $region56: #{transformer_encoder_layer.1} parent=1 // pred_region
      %s2302 = ssub.s32 256, 256
      %2303 = vsyncadd [#allocation4], %s2302
      %s2304 = sshll.u32 [#allocation11], 4
      %s2305 = int_to_ptr.vmem [resolvable:$true] %s2304
      %2310 = dma.vmem_to_hbm [thread:$0]  %s2305, 256, %s8, [#allocation4], 32, 32, 2
    $region57: #{transformer_encoder_layer.1} parent=1 // pred_fallthru
      _
    // Predicated region
    $region58: #{transformer_encoder_layer.1} parent=1 // pred_check
      _
    $region59: #{transformer_encoder_layer.1} parent=1 // pred_check_branch
      %2312 = sbr.rel (0) target = $region61
    $region60: #{transformer_encoder_layer.1} parent=1 // pred_region
      %2313 = dma.done [#allocation4], 256
    $region61: #{transformer_encoder_layer.1} parent=1 // pred_fallthru
      _
    %2314 = vsyncpa [#allocation3], 1
    %2315 = vsyncpa [#allocation6], 1
    %2316 = vsyncpa [#allocation9], 1
    %2317 = vsyncpa [#allocation4], 1

</llo_original>
